<compile_context>
chip_gen: v7x
topology: tpu7x:2x2x1
jax: 0.10.0
libtpu: 0.0.40
codegen_flags: <defaults>
</compile_context>

<pallas_src>
import functools
import math

import numpy as np
import jax
import jax.numpy as jnp
from jax.experimental import pallas as pl
from jax.experimental.pallas import tpu as pltpu


def _linear_resize_matrix(in_size, out_size, scale_factor, align_corners):
    """(out_size, in_size) weights replicating PyTorch's 1-D linear resize."""
    out_idx = np.arange(out_size, dtype=np.float64)
    if align_corners:
        src = (out_idx * (in_size - 1) / (out_size - 1)) if out_size > 1 else np.zeros_like(out_idx)
    else:
        scale = (1.0 / scale_factor) if scale_factor else in_size / out_size
        src = np.maximum((out_idx + 0.5) * scale - 0.5, 0.0)
    i0 = np.clip(np.floor(src).astype(np.int64), 0, in_size - 1)
    i1 = np.minimum(i0 + 1, in_size - 1)
    frac = src - i0
    m = np.zeros((out_size, in_size), dtype=np.float64)
    rows = np.arange(out_size)
    m[rows, i0] += 1.0 - frac
    m[rows, i1] += frac
    return m


def _interp2d_kernel(x_ref, wh_ref, wwt_ref, o_ref, *, nb, nc):
    # x_ref: (nb, nc, H, W)   wh_ref: (Ho, H)   wwt_ref: (W, Wo)   o_ref: (nb, nc, Ho, Wo)
    wh = wh_ref[...]
    wwt = wwt_ref[...]
    for b in range(nb):
        for c in range(nc):
            plane = x_ref[b, c, :, :].astype(jnp.float32)                   # (H, W)
            t = jnp.dot(wh, plane, preferred_element_type=jnp.float32)      # (Ho, W)
            o_ref[b, c, :, :] = jnp.dot(
                t, wwt, preferred_element_type=jnp.float32
            ).astype(o_ref.dtype)                                           # (Ho, Wo)


def pallas_interpolate(x, scale_factor, mode="bilinear", align_corners=False):
    """Pallas TPU equivalent of F.interpolate(x, scale_factor, mode, align_corners)
    for 4-D NCHW input with (bi)linear mode."""
    if mode not in ("bilinear", "linear"):
        # TODO(synk): other F.interpolate modes (nearest, bicubic, area, trilinear)
        # are not implemented.
        raise NotImplementedError(f"mode={mode!r} not supported")

    B, C, H, W = x.shape
    Ho = int(math.floor(H * scale_factor))
    Wo = int(math.floor(W * scale_factor))

    wh = jnp.asarray(_linear_resize_matrix(H, Ho, scale_factor, align_corners), jnp.float32)
    wwt = jnp.asarray(_linear_resize_matrix(W, Wo, scale_factor, align_corners).T, jnp.float32)

    itemsize = np.dtype(x.dtype).itemsize
    # Rough double-buffered single-block footprint.
    single_block_bytes = (
        2 * itemsize * (B * C * H * W + B * C * Ho * Wo) + 8 * (wh.size + wwt.size)
    )

    if single_block_bytes <= 8 * 1024 * 1024:
        # Tiny working set: one grid step, whole tensor VMEM-resident.
        grid = (1,)
        nb = B
        x_block, o_block = (B, C, H, W), (B, C, Ho, Wo)
        x_map = lambda i: (0, 0, 0, 0)
        o_map = lambda i: (0, 0, 0, 0)
        semantics = ("arbitrary",)
    else:
        # VMEM guard for large inputs: tile over the batch axis.
        grid = (B,)
        nb = 1
        x_block, o_block = (1, C, H, W), (1, C, Ho, Wo)
        x_map = lambda i: (i, 0, 0, 0)
        o_map = lambda i: (i, 0, 0, 0)
        semantics = ("parallel",)

    kernel = functools.partial(_interp2d_kernel, nb=nb, nc=C)

    return pl.pallas_call(
        kernel,
        out_shape=jax.ShapeDtypeStruct((B, C, Ho, Wo), x.dtype),
        grid=grid,
        in_specs=[
            pl.BlockSpec(x_block, x_map),
            pl.BlockSpec((Ho, H), lambda i: (0, 0)),
            pl.BlockSpec((W, Wo), lambda i: (0, 0)),
        ],
        out_specs=pl.BlockSpec(o_block, o_map),
        compiler_params=pltpu.CompilerParams(dimension_semantics=semantics),
    )(x, wh, wwt)


if __name__ == "__main__":
    # Module under test: Interpolate(scale_factor=2, mode="bilinear",
    # align_corners=False) applied to an NCHW tensor.
    scale_factor, mode, align_corners = 2, "bilinear", False

    key = jax.random.PRNGKey(0)
    x = jax.random.normal(key, (2, 4, 16, 16), dtype=jnp.float32)

    out = pallas_interpolate(x, scale_factor, mode, align_corners)
    out = jax.block_until_ready(out)

    # Pure-JAX reference built from the same (PyTorch-exact) weight matrices.
    B, C, H, W = x.shape
    Ho, Wo = int(H * scale_factor), int(W * scale_factor)
    wh_ref = jnp.asarray(_linear_resize_matrix(H, Ho, scale_factor, align_corners), jnp.float32)
    ww_ref = jnp.asarray(_linear_resize_matrix(W, Wo, scale_factor, align_corners), jnp.float32)
    ref = jnp.einsum("Hh,bchw,Ww->bcHW", wh_ref, x, ww_ref)

    assert out.shape == (B, C, Ho, Wo), out.shape
    assert out.dtype == x.dtype, out.dtype
    assert jnp.allclose(out, ref, rtol=1e-5, atol=1e-5), float(jnp.max(jnp.abs(out - ref)))

    print("KERNEL_OK")
</pallas_src>

<mosaic_0001>
module attributes {stable_mosaic.version = 11 : i64} {
  func.func @_interp2d_kernel(%arg0: i32, %arg1: memref<2x4x16x16xf32, #tpu.memory_space<vmem>>, %arg2: memref<32x16xf32, #tpu.memory_space<vmem>>, %arg3: memref<16x32xf32, #tpu.memory_space<vmem>>, %arg4: memref<2x4x32x32xf32, #tpu.memory_space<vmem>>) attributes {dimension_semantics = [#tpu.dimension_semantics<arbitrary>], iteration_bounds = array<i64: 1>, scalar_prefetch = 0 : i64, scratch_operands = 0 : i64, tpu.core_type = #tpu.core_type<tc>, window_params = [{pipeline_mode = #tpu.pipeline_mode<synchronous>, transform_indices = @transform_0, window_bounds = array<i64: 2, 4, 16, 16>}, {pipeline_mode = #tpu.pipeline_mode<synchronous>, transform_indices = @transform_1, window_bounds = array<i64: 32, 16>}, {pipeline_mode = #tpu.pipeline_mode<synchronous>, transform_indices = @transform_2, window_bounds = array<i64: 16, 32>}, {pipeline_mode = #tpu.pipeline_mode<synchronous>, transform_indices = @transform_3, window_bounds = array<i64: 2, 4, 32, 32>}]} {
    %c0 = arith.constant 0 : index
    %c0_0 = arith.constant 0 : index
    %0 = vector.load %arg2[%c0, %c0_0] : memref<32x16xf32, #tpu.memory_space<vmem>>, vector<32x16xf32>
    %c0_1 = arith.constant 0 : index
    %c0_2 = arith.constant 0 : index
    %1 = vector.load %arg3[%c0_1, %c0_2] : memref<16x32xf32, #tpu.memory_space<vmem>>, vector<16x32xf32>
    %c0_3 = arith.constant 0 : index
    %c0_4 = arith.constant 0 : index
    %c0_5 = arith.constant 0 : index
    %c0_6 = arith.constant 0 : index
    %2 = vector.load %arg1[%c0_3, %c0_4, %c0_5, %c0_6] : memref<2x4x16x16xf32, #tpu.memory_space<vmem>>, vector<1x1x16x16xf32>
    %3 = vector.shape_cast %2 : vector<1x1x16x16xf32> to vector<16x16xf32>
    %cst = arith.constant dense<0.000000e+00> : vector<32x16xf32>
    %4 = tpu.matmul %0, %3, %cst {dimension_numbers = #tpu.dot_dimension_numbers<[1], [0], [0], [1], [0, 0, 1, 1], [], []>} : vector<32x16xf32>, vector<16x16xf32>, vector<32x16xf32> -> vector<32x16xf32>
    %cst_7 = arith.constant dense<0.000000e+00> : vector<32x32xf32>
    %5 = tpu.matmul %4, %1, %cst_7 {dimension_numbers = #tpu.dot_dimension_numbers<[1], [0], [0], [1], [0, 0, 1, 1], [], []>} : vector<32x16xf32>, vector<16x32xf32>, vector<32x32xf32> -> vector<32x32xf32>
    %c0_8 = arith.constant 0 : index
    %c0_9 = arith.constant 0 : index
    %c0_10 = arith.constant 0 : index
    %c0_11 = arith.constant 0 : index
    %6 = vector.load %arg4[%c0_8, %c0_9, %c0_10, %c0_11] : memref<2x4x32x32xf32, #tpu.memory_space<vmem>>, vector<1x1x32x32xf32>
    %7 = vector.shape_cast %6 : vector<1x1x32x32xf32> to vector<32x32xf32>
    %8 = vector.shape_cast %5 : vector<32x32xf32> to vector<1x1x32x32xf32>
    tpu.vector_store %arg4[%c0_8, %c0_9, %c0_10, %c0_11], %8 {strides = array<i32>} : memref<2x4x32x32xf32, #tpu.memory_space<vmem>>, vector<1x1x32x32xf32>,
    %c0_12 = arith.constant 0 : index
    %c1 = arith.constant 1 : index
    %c0_13 = arith.constant 0 : index
    %c0_14 = arith.constant 0 : index
    %9 = vector.load %arg1[%c0_12, %c1, %c0_13, %c0_14] : memref<2x4x16x16xf32, #tpu.memory_space<vmem>>, vector<1x1x16x16xf32>
    %10 = vector.shape_cast %9 : vector<1x1x16x16xf32> to vector<16x16xf32>
    %cst_15 = arith.constant dense<0.000000e+00> : vector<32x16xf32>
    %11 = tpu.matmul %0, %10, %cst_15 {dimension_numbers = #tpu.dot_dimension_numbers<[1], [0], [0], [1], [0, 0, 1, 1], [], []>} : vector<32x16xf32>, vector<16x16xf32>, vector<32x16xf32> -> vector<32x16xf32>
    %cst_16 = arith.constant dense<0.000000e+00> : vector<32x32xf32>
    %12 = tpu.matmul %11, %1, %cst_16 {dimension_numbers = #tpu.dot_dimension_numbers<[1], [0], [0], [1], [0, 0, 1, 1], [], []>} : vector<32x16xf32>, vector<16x32xf32>, vector<32x32xf32> -> vector<32x32xf32>
    %c0_17 = arith.constant 0 : index
    %c1_18 = arith.constant 1 : index
    %c0_19 = arith.constant 0 : index
    %c0_20 = arith.constant 0 : index
    %13 = vector.load %arg4[%c0_17, %c1_18, %c0_19, %c0_20] : memref<2x4x32x32xf32, #tpu.memory_space<vmem>>, vector<1x1x32x32xf32>
    %14 = vector.shape_cast %13 : vector<1x1x32x32xf32> to vector<32x32xf32>
    %15 = vector.shape_cast %12 : vector<32x32xf32> to vector<1x1x32x32xf32>
    tpu.vector_store %arg4[%c0_17, %c1_18, %c0_19, %c0_20], %15 {strides = array<i32>} : memref<2x4x32x32xf32, #tpu.memory_space<vmem>>, vector<1x1x32x32xf32>,
    %c0_21 = arith.constant 0 : index
    %c2 = arith.constant 2 : index
    %c0_22 = arith.constant 0 : index
    %c0_23 = arith.constant 0 : index
    %16 = vector.load %arg1[%c0_21, %c2, %c0_22, %c0_23] : memref<2x4x16x16xf32, #tpu.memory_space<vmem>>, vector<1x1x16x16xf32>
    %17 = vector.shape_cast %16 : vector<1x1x16x16xf32> to vector<16x16xf32>
    %cst_24 = arith.constant dense<0.000000e+00> : vector<32x16xf32>
    %18 = tpu.matmul %0, %17, %cst_24 {dimension_numbers = #tpu.dot_dimension_numbers<[1], [0], [0], [1], [0, 0, 1, 1], [], []>} : vector<32x16xf32>, vector<16x16xf32>, vector<32x16xf32> -> vector<32x16xf32>
    %cst_25 = arith.constant dense<0.000000e+00> : vector<32x32xf32>
    %19 = tpu.matmul %18, %1, %cst_25 {dimension_numbers = #tpu.dot_dimension_numbers<[1], [0], [0], [1], [0, 0, 1, 1], [], []>} : vector<32x16xf32>, vector<16x32xf32>, vector<32x32xf32> -> vector<32x32xf32>
    %c0_26 = arith.constant 0 : index
    %c2_27 = arith.constant 2 : index
    %c0_28 = arith.constant 0 : index
    %c0_29 = arith.constant 0 : index
    %20 = vector.load %arg4[%c0_26, %c2_27, %c0_28, %c0_29] : memref<2x4x32x32xf32, #tpu.memory_space<vmem>>, vector<1x1x32x32xf32>
    %21 = vector.shape_cast %20 : vector<1x1x32x32xf32> to vector<32x32xf32>
    %22 = vector.shape_cast %19 : vector<32x32xf32> to vector<1x1x32x32xf32>
    tpu.vector_store %arg4[%c0_26, %c2_27, %c0_28, %c0_29], %22 {strides = array<i32>} : memref<2x4x32x32xf32, #tpu.memory_space<vmem>>, vector<1x1x32x32xf32>,
    %c0_30 = arith.constant 0 : index
    %c3 = arith.constant 3 : index
    %c0_31 = arith.constant 0 : index
    %c0_32 = arith.constant 0 : index
    %23 = vector.load %arg1[%c0_30, %c3, %c0_31, %c0_32] : memref<2x4x16x16xf32, #tpu.memory_space<vmem>>, vector<1x1x16x16xf32>
    %24 = vector.shape_cast %23 : vector<1x1x16x16xf32> to vector<16x16xf32>
    %cst_33 = arith.constant dense<0.000000e+00> : vector<32x16xf32>
    %25 = tpu.matmul %0, %24, %cst_33 {dimension_numbers = #tpu.dot_dimension_numbers<[1], [0], [0], [1], [0, 0, 1, 1], [], []>} : vector<32x16xf32>, vector<16x16xf32>, vector<32x16xf32> -> vector<32x16xf32>
    %cst_34 = arith.constant dense<0.000000e+00> : vector<32x32xf32>
    %26 = tpu.matmul %25, %1, %cst_34 {dimension_numbers = #tpu.dot_dimension_numbers<[1], [0], [0], [1], [0, 0, 1, 1], [], []>} : vector<32x16xf32>, vector<16x32xf32>, vector<32x32xf32> -> vector<32x32xf32>
    %c0_35 = arith.constant 0 : index
    %c3_36 = arith.constant 3 : index
    %c0_37 = arith.constant 0 : index
    %c0_38 = arith.constant 0 : index
    %27 = vector.load %arg4[%c0_35, %c3_36, %c0_37, %c0_38] : memref<2x4x32x32xf32, #tpu.memory_space<vmem>>, vector<1x1x32x32xf32>
    %28 = vector.shape_cast %27 : vector<1x1x32x32xf32> to vector<32x32xf32>
    %29 = vector.shape_cast %26 : vector<32x32xf32> to vector<1x1x32x32xf32>
    tpu.vector_store %arg4[%c0_35, %c3_36, %c0_37, %c0_38], %29 {strides = array<i32>} : memref<2x4x32x32xf32, #tpu.memory_space<vmem>>, vector<1x1x32x32xf32>,
    %c1_39 = arith.constant 1 : index
    %c0_40 = arith.constant 0 : index
    %c0_41 = arith.constant 0 : index
    %c0_42 = arith.constant 0 : index
    %30 = vector.load %arg1[%c1_39, %c0_40, %c0_41, %c0_42] : memref<2x4x16x16xf32, #tpu.memory_space<vmem>>, vector<1x1x16x16xf32>
    %31 = vector.shape_cast %30 : vector<1x1x16x16xf32> to vector<16x16xf32>
    %cst_43 = arith.constant dense<0.000000e+00> : vector<32x16xf32>
    %32 = tpu.matmul %0, %31, %cst_43 {dimension_numbers = #tpu.dot_dimension_numbers<[1], [0], [0], [1], [0, 0, 1, 1], [], []>} : vector<32x16xf32>, vector<16x16xf32>, vector<32x16xf32> -> vector<32x16xf32>
    %cst_44 = arith.constant dense<0.000000e+00> : vector<32x32xf32>
    %33 = tpu.matmul %32, %1, %cst_44 {dimension_numbers = #tpu.dot_dimension_numbers<[1], [0], [0], [1], [0, 0, 1, 1], [], []>} : vector<32x16xf32>, vector<16x32xf32>, vector<32x32xf32> -> vector<32x32xf32>
    %c1_45 = arith.constant 1 : index
    %c0_46 = arith.constant 0 : index
    %c0_47 = arith.constant 0 : index
    %c0_48 = arith.constant 0 : index
    %34 = vector.load %arg4[%c1_45, %c0_46, %c0_47, %c0_48] : memref<2x4x32x32xf32, #tpu.memory_space<vmem>>, vector<1x1x32x32xf32>
    %35 = vector.shape_cast %34 : vector<1x1x32x32xf32> to vector<32x32xf32>
    %36 = vector.shape_cast %33 : vector<32x32xf32> to vector<1x1x32x32xf32>
    tpu.vector_store %arg4[%c1_45, %c0_46, %c0_47, %c0_48], %36 {strides = array<i32>} : memref<2x4x32x32xf32, #tpu.memory_space<vmem>>, vector<1x1x32x32xf32>,
    %c1_49 = arith.constant 1 : index
    %c1_50 = arith.constant 1 : index
    %c0_51 = arith.constant 0 : index
    %c0_52 = arith.constant 0 : index
    %37 = vector.load %arg1[%c1_49, %c1_50, %c0_51, %c0_52] : memref<2x4x16x16xf32, #tpu.memory_space<vmem>>, vector<1x1x16x16xf32>
    %38 = vector.shape_cast %37 : vector<1x1x16x16xf32> to vector<16x16xf32>
    %cst_53 = arith.constant dense<0.000000e+00> : vector<32x16xf32>
    %39 = tpu.matmul %0, %38, %cst_53 {dimension_numbers = #tpu.dot_dimension_numbers<[1], [0], [0], [1], [0, 0, 1, 1], [], []>} : vector<32x16xf32>, vector<16x16xf32>, vector<32x16xf32> -> vector<32x16xf32>
    %cst_54 = arith.constant dense<0.000000e+00> : vector<32x32xf32>
    %40 = tpu.matmul %39, %1, %cst_54 {dimension_numbers = #tpu.dot_dimension_numbers<[1], [0], [0], [1], [0, 0, 1, 1], [], []>} : vector<32x16xf32>, vector<16x32xf32>, vector<32x32xf32> -> vector<32x32xf32>
    %c1_55 = arith.constant 1 : index
    %c1_56 = arith.constant 1 : index
    %c0_57 = arith.constant 0 : index
    %c0_58 = arith.constant 0 : index
    %41 = vector.load %arg4[%c1_55, %c1_56, %c0_57, %c0_58] : memref<2x4x32x32xf32, #tpu.memory_space<vmem>>, vector<1x1x32x32xf32>
    %42 = vector.shape_cast %41 : vector<1x1x32x32xf32> to vector<32x32xf32>
    %43 = vector.shape_cast %40 : vector<32x32xf32> to vector<1x1x32x32xf32>
    tpu.vector_store %arg4[%c1_55, %c1_56, %c0_57, %c0_58], %43 {strides = array<i32>} : memref<2x4x32x32xf32, #tpu.memory_space<vmem>>, vector<1x1x32x32xf32>,
    %c1_59 = arith.constant 1 : index
    %c2_60 = arith.constant 2 : index
    %c0_61 = arith.constant 0 : index
    %c0_62 = arith.constant 0 : index
    %44 = vector.load %arg1[%c1_59, %c2_60, %c0_61, %c0_62] : memref<2x4x16x16xf32, #tpu.memory_space<vmem>>, vector<1x1x16x16xf32>
    %45 = vector.shape_cast %44 : vector<1x1x16x16xf32> to vector<16x16xf32>
    %cst_63 = arith.constant dense<0.000000e+00> : vector<32x16xf32>
    %46 = tpu.matmul %0, %45, %cst_63 {dimension_numbers = #tpu.dot_dimension_numbers<[1], [0], [0], [1], [0, 0, 1, 1], [], []>} : vector<32x16xf32>, vector<16x16xf32>, vector<32x16xf32> -> vector<32x16xf32>
    %cst_64 = arith.constant dense<0.000000e+00> : vector<32x32xf32>
    %47 = tpu.matmul %46, %1, %cst_64 {dimension_numbers = #tpu.dot_dimension_numbers<[1], [0], [0], [1], [0, 0, 1, 1], [], []>} : vector<32x16xf32>, vector<16x32xf32>, vector<32x32xf32> -> vector<32x32xf32>
    %c1_65 = arith.constant 1 : index
    %c2_66 = arith.constant 2 : index
    %c0_67 = arith.constant 0 : index
    %c0_68 = arith.constant 0 : index
    %48 = vector.load %arg4[%c1_65, %c2_66, %c0_67, %c0_68] : memref<2x4x32x32xf32, #tpu.memory_space<vmem>>, vector<1x1x32x32xf32>
    %49 = vector.shape_cast %48 : vector<1x1x32x32xf32> to vector<32x32xf32>
    %50 = vector.shape_cast %47 : vector<32x32xf32> to vector<1x1x32x32xf32>
    tpu.vector_store %arg4[%c1_65, %c2_66, %c0_67, %c0_68], %50 {strides = array<i32>} : memref<2x4x32x32xf32, #tpu.memory_space<vmem>>, vector<1x1x32x32xf32>,
    %c1_69 = arith.constant 1 : index
    %c3_70 = arith.constant 3 : index
    %c0_71 = arith.constant 0 : index
    %c0_72 = arith.constant 0 : index
    %51 = vector.load %arg1[%c1_69, %c3_70, %c0_71, %c0_72] : memref<2x4x16x16xf32, #tpu.memory_space<vmem>>, vector<1x1x16x16xf32>
    %52 = vector.shape_cast %51 : vector<1x1x16x16xf32> to vector<16x16xf32>
    %cst_73 = arith.constant dense<0.000000e+00> : vector<32x16xf32>
    %53 = tpu.matmul %0, %52, %cst_73 {dimension_numbers = #tpu.dot_dimension_numbers<[1], [0], [0], [1], [0, 0, 1, 1], [], []>} : vector<32x16xf32>, vector<16x16xf32>, vector<32x16xf32> -> vector<32x16xf32>
    %cst_74 = arith.constant dense<0.000000e+00> : vector<32x32xf32>
    %54 = tpu.matmul %53, %1, %cst_74 {dimension_numbers = #tpu.dot_dimension_numbers<[1], [0], [0], [1], [0, 0, 1, 1], [], []>} : vector<32x16xf32>, vector<16x32xf32>, vector<32x32xf32> -> vector<32x32xf32>
    %c1_75 = arith.constant 1 : index
    %c3_76 = arith.constant 3 : index
    %c0_77 = arith.constant 0 : index
    %c0_78 = arith.constant 0 : index
    %55 = vector.load %arg4[%c1_75, %c3_76, %c0_77, %c0_78] : memref<2x4x32x32xf32, #tpu.memory_space<vmem>>, vector<1x1x32x32xf32>
    %56 = vector.shape_cast %55 : vector<1x1x32x32xf32> to vector<32x32xf32>
    %57 = vector.shape_cast %54 : vector<32x32xf32> to vector<1x1x32x32xf32>
    tpu.vector_store %arg4[%c1_75, %c3_76, %c0_77, %c0_78], %57 {strides = array<i32>} : memref<2x4x32x32xf32, #tpu.memory_space<vmem>>, vector<1x1x32x32xf32>,
    return
  }
  func.func @transform_0(%arg0: i32) -> (i32, i32, i32, i32) {
    %c0_i32 = arith.constant 0 : i32
    %c0_i32_0 = arith.constant 0 : i32
    %c0_i32_1 = arith.constant 0 : i32
    %c0_i32_2 = arith.constant 0 : i32
    %c0_i32_3 = arith.constant 0 : i32
    return %c0_i32, %c0_i32_0, %c0_i32_1, %c0_i32_2 : i32, i32, i32, i32
  }
  func.func @transform_1(%arg0: i32) -> (i32, i32) {
    %c0_i32 = arith.constant 0 : i32
    %c0_i32_0 = arith.constant 0 : i32
    %c0_i32_1 = arith.constant 0 : i32
    return %c0_i32, %c0_i32_0 : i32, i32
  }
  func.func @transform_2(%arg0: i32) -> (i32, i32) {
    %c0_i32 = arith.constant 0 : i32
    %c0_i32_0 = arith.constant 0 : i32
    %c0_i32_1 = arith.constant 0 : i32
    return %c0_i32, %c0_i32_0 : i32, i32
  }
  func.func @transform_3(%arg0: i32) -> (i32, i32, i32, i32) {
    %c0_i32 = arith.constant 0 : i32
    %c0_i32_0 = arith.constant 0 : i32
    %c0_i32_1 = arith.constant 0 : i32
    %c0_i32_2 = arith.constant 0 : i32
    %c0_i32_3 = arith.constant 0 : i32
    return %c0_i32, %c0_i32_0, %c0_i32_1, %c0_i32_2 : i32, i32, i32, i32
  }
}

</mosaic_0001>

<llo_original>
// kernel: tpu_custom_call.1
$region0: #{tpu_custom_call.1}
  #allocation0 [shape = 'u32[]', space=smem, size = 0x4, offset = 0x4, fixed_abs, tag = 'smem constant byte address 0x4 - core index']
  #allocation1 [shape = 'u32[144,128]{1,0:T(1,128)}', space=vmem, size = 0x12000, scoped, tag = 'internal scratch']
  %s0 = inlined_call_operand.hbm [shape: f32[2,4,16,16], index: 0, kind: input, shape index: {}]
  %s1 = inlined_call_operand.vmem [shape: f32[32,16], index: 1, kind: input, shape index: {}]
  %s2 = inlined_call_operand.vmem [shape: f32[16,32], index: 2, kind: input, shape index: {}]
  %s3 = inlined_call_operand.hbm [shape: f32[2,4,32,32], index: 3, kind: output, shape index: {}]
  %s4 = sld [smem:[#allocation0]]
  $region26: #{tpu_custom_call.1} parent=0
    _
  %s6 = ssub.s32 1, %s4
  %s7 = scalar_select 0, %s6, %s4
  $region1: #{tpu_custom_call.1} parent=0
    #allocation2 [shape = 'u8[65536]{0}', space=vmem, size = 0x10000, scoped, tag = 'input window, operand 0, single buffered']
    #allocation3 [shape = 's32[1]{0}', space=sflag, size = 0x4, scoped, tag = 'scoped memory for tpu_custom_call.1']
    #allocation4 [shape = 's32[1]{0}', space=sflag, size = 0x4, scoped, tag = 'scoped memory for tpu_custom_call.1']
    #allocation5 [shape = 'u8[131072]{0}', space=vmem, size = 0x20000, scoped, tag = 'output window, operand 0, single buffered']
    %8 = vsyncpa [#allocation3], 0
    %9 = vsyncpa [#allocation4], 0
    // Predicated region
    $region2: #{tpu_custom_call.1} parent=1 // pred_check
      _
    $region3: #{tpu_custom_call.1} parent=1 // pred_check_branch
      %11 = sbr.rel (0) target = $region5
    $region4: #{tpu_custom_call.1} parent=1 // pred_region
      %s13 = ssub.s32 2048, 2048
      %14 = vsyncadd [#allocation3], %s13
      %s15 = sshll.u32 [#allocation2], 4
      %s16 = int_to_ptr.vmem [resolvable:$true] %s15
      %21 = dma.hbm_to_vmem [thread:$0]  %s0, 2048, %s16, [#allocation3], 128, 128, 8
    $region5: #{tpu_custom_call.1} parent=1 // pred_fallthru
      _
    // Predicated region
    $region6: #{tpu_custom_call.1} parent=1 // pred_check
      _
    $region7: #{tpu_custom_call.1} parent=1 // pred_check_branch
      %23 = sbr.rel (0) target = $region9
    $region8: #{tpu_custom_call.1} parent=1 // pred_region
      _
    $region9: #{tpu_custom_call.1} parent=1 // pred_fallthru
      _
    // Predicated region
    $region10: #{tpu_custom_call.1} parent=1 // pred_check
      _
    $region11: #{tpu_custom_call.1} parent=1 // pred_check_branch
      %25 = sbr.rel (0) target = $region13
    $region12: #{tpu_custom_call.1} parent=1 // pred_region
      _
    $region13: #{tpu_custom_call.1} parent=1 // pred_fallthru
      _
    // Predicated region
    $region14: #{tpu_custom_call.1} parent=1 // pred_check
      _
    $region15: #{tpu_custom_call.1} parent=1 // pred_check_branch
      %27 = sbr.rel (0) target = $region17
    $region16: #{tpu_custom_call.1} parent=1 // pred_region
      %28 = dma.done [#allocation3], 2048
    $region17: #{tpu_custom_call.1} parent=1 // pred_fallthru
      _
    %v29 = vld [vmem:[%s1] sm:$0xff]
    %v30 = vld [vmem:[%s1 + $0x8] sm:$0xff]
    %v31 = vld [vmem:[%s1 + $0x10] sm:$0xff]
    %v32 = vld [vmem:[%s1 + $0x18] sm:$0xff]
    %v33 = vld [vmem:[%s2] sm:$0xff]
    %v34 = vld [vmem:[%s2 + $0x8] sm:$0xff]
    %v35 = vld [vmem:[#allocation2] sm:$0xff]
    %v36 = vld [vmem:[#allocation2 + $0x8] sm:$0xff]
    %vm37 = vcmask 130048
    %v39 = vsel %vm37, %v29, 0
    %v42 = vsel %vm37, %v30, 0
    %v45 = vsel %vm37, %v31, 0
    %v48 = vsel %vm37, %v32, 0
    %50 = vmatprep.subr.mxu0 0.0
    %51 = vmatpush1.msra.mxu0 %v35
    %52 = vmatprep.subr.mxu0 0.0
    %53 = vmatpush1.msra.mxu0 %v36
    %54 = vmatprep.subr.mxu0 0.0
    %55 = vmatpush1.msra.mxu0 0.0
    %56 = vmatprep.subr.mxu0 0.0
    %57 = vmatpush1.msra.mxu0 0.0
    %58 = vmatprep.subr.mxu0 0.0
    %59 = vmatpush1.msra.mxu0 0.0
    %60 = vmatprep.subr.mxu0 0.0
    %61 = vmatpush1.msra.mxu0 0.0
    %62 = vmatprep.subr.mxu0 0.0
    %63 = vmatpush1.msra.mxu0 0.0
    %64 = vmatprep.subr.mxu0 0.0
    %65 = vmatpush1.msra.mxu0 0.0
    %66 = vmatprep.subr.mxu0 0.0
    %67 = vmatpush1.msra.mxu0 0.0
    %68 = vmatprep.subr.mxu0 0.0
    %69 = vmatpush1.msra.mxu0 0.0
    %70 = vmatprep.subr.mxu0 0.0
    %71 = vmatpush1.msra.mxu0 0.0
    %72 = vmatprep.subr.mxu0 0.0
    %73 = vmatpush1.msra.mxu0 0.0
    %74 = vmatprep.subr.mxu0 0.0
    %75 = vmatpush1.msra.mxu0 0.0
    %76 = vmatprep.subr.mxu0 0.0
    %77 = vmatpush1.msra.mxu0 0.0
    %78 = vmatprep.subr.mxu0 0.0
    %79 = vmatpush1.msra.mxu0 0.0
    %80 = vmatprep.subr.mxu0 0.0
    %81 = vmatpush1.msra.mxu0 0.0
    %82 = vmatprep.subr.mxu0 0.0
    %83 = vmatpush1.msra.mxu0 0.0
    %84 = vmatprep.subr.mxu0 0.0
    %85 = vmatpush1.msra.mxu0 0.0
    %86 = vmatprep.subr.mxu0 0.0
    %87 = vmatpush1.msra.mxu0 0.0
    %88 = vmatprep.subr.mxu0 0.0
    %89 = vmatpush1.msra.mxu0 0.0
    %90 = vmatprep.subr.mxu0 0.0
    %91 = vmatpush1.msra.mxu0 0.0
    %92 = vmatprep.subr.mxu0 0.0
    %93 = vmatpush1.msra.mxu0 0.0
    %94 = vmatprep.subr.mxu0 0.0
    %95 = vmatpush1.msra.mxu0 0.0
    %96 = vmatprep.subr.mxu0 0.0
    %97 = vmatpush1.msra.mxu0 0.0
    %98 = vmatprep.subr.mxu0 0.0
    %99 = vmatpush1.msra.mxu0 0.0
    %100 = vmatprep.subr.mxu0 0.0
    %101 = vmatpush1.msra.mxu0 0.0
    %102 = vmatprep.subr.mxu0 0.0
    %103 = vmatpush1.msra.mxu0 0.0
    %104 = vmatprep.subr.mxu0 0.0
    %105 = vmatpush1.msra.mxu0 0.0
    %106 = vmatprep.subr.mxu0 0.0
    %107 = vmatpush1.msra.mxu0 0.0
    %108 = vmatprep.subr.mxu0 0.0
    %109 = vmatpush1.msra.mxu0 0.0
    %110 = vmatprep.subr.mxu0 0.0
    %111 = vmatpush1.msra.mxu0 0.0
    %112 = vmatprep.subr.mxu0 0.0
    %113 = vmatpush1.msra.mxu0 0.0
    %114 = vmatprep.mubr.f32.mxu0 0.0
    %115 = vmatmul.mubr.f32.gmra.mrb[0].mxu0 %v39
    %v116 = vpop.f32.mrb[0].mxu0
    %v117 = vadd.f32 0.0, %v116
    %v118 = vpop.f32.mrb[0].mxu0
    %119 = vmatprep.mubr.f32.mxu0 0.0
    %120 = vmatmul.mubr.f32.gmra.mrb[0].mxu0 %v42
    %v121 = vpop.f32.mrb[0].mxu0
    %v122 = vadd.f32 0.0, %v121
    %v123 = vpop.f32.mrb[0].mxu0
    %124 = vmatprep.mubr.f32.mxu0 0.0
    %125 = vmatmul.mubr.f32.gmra.mrb[0].mxu0 %v45
    %v126 = vpop.f32.mrb[0].mxu0
    %v127 = vadd.f32 0.0, %v126
    %v128 = vpop.f32.mrb[0].mxu0
    %129 = vmatprep.mubr.f32.mxu0 0.0
    %130 = vmatmul.mubr.f32.gmra.mrb[0].mxu0 %v48
    %v131 = vpop.f32.mrb[0].mxu0
    %v132 = vadd.f32 0.0, %v131
    %v133 = vpop.f32.mrb[0].mxu0
    %134 = vdwg.mxu0
    %v136 = vsel %vm37, %v117, 0
    %v139 = vsel %vm37, %v122, 0
    %v142 = vsel %vm37, %v127, 0
    %v145 = vsel %vm37, %v132, 0
    %147 = vmatprep.subr.mxu0 0.0
    %148 = vmatpush1.msra.mxu0 %v33
    %149 = vmatprep.subr.mxu0 0.0
    %150 = vmatpush1.msra.mxu0 %v34
    %151 = vmatprep.subr.mxu0 0.0
    %152 = vmatpush1.msra.mxu0 0.0
    %153 = vmatprep.subr.mxu0 0.0
    %154 = vmatpush1.msra.mxu0 0.0
    %155 = vmatprep.subr.mxu0 0.0
    %156 = vmatpush1.msra.mxu0 0.0
    %157 = vmatprep.subr.mxu0 0.0
    %158 = vmatpush1.msra.mxu0 0.0
    %159 = vmatprep.subr.mxu0 0.0
    %160 = vmatpush1.msra.mxu0 0.0
    %161 = vmatprep.subr.mxu0 0.0
    %162 = vmatpush1.msra.mxu0 0.0
    %163 = vmatprep.subr.mxu0 0.0
    %164 = vmatpush1.msra.mxu0 0.0
    %165 = vmatprep.subr.mxu0 0.0
    %166 = vmatpush1.msra.mxu0 0.0
    %167 = vmatprep.subr.mxu0 0.0
    %168 = vmatpush1.msra.mxu0 0.0
    %169 = vmatprep.subr.mxu0 0.0
    %170 = vmatpush1.msra.mxu0 0.0
    %171 = vmatprep.subr.mxu0 0.0
    %172 = vmatpush1.msra.mxu0 0.0
    %173 = vmatprep.subr.mxu0 0.0
    %174 = vmatpush1.msra.mxu0 0.0
    %175 = vmatprep.subr.mxu0 0.0
    %176 = vmatpush1.msra.mxu0 0.0
    %177 = vmatprep.subr.mxu0 0.0
    %178 = vmatpush1.msra.mxu0 0.0
    %179 = vmatprep.subr.mxu0 0.0
    %180 = vmatpush1.msra.mxu0 0.0
    %181 = vmatprep.subr.mxu0 0.0
    %182 = vmatpush1.msra.mxu0 0.0
    %183 = vmatprep.subr.mxu0 0.0
    %184 = vmatpush1.msra.mxu0 0.0
    %185 = vmatprep.subr.mxu0 0.0
    %186 = vmatpush1.msra.mxu0 0.0
    %187 = vmatprep.subr.mxu0 0.0
    %188 = vmatpush1.msra.mxu0 0.0
    %189 = vmatprep.subr.mxu0 0.0
    %190 = vmatpush1.msra.mxu0 0.0
    %191 = vmatprep.subr.mxu0 0.0
    %192 = vmatpush1.msra.mxu0 0.0
    %193 = vmatprep.subr.mxu0 0.0
    %194 = vmatpush1.msra.mxu0 0.0
    %195 = vmatprep.subr.mxu0 0.0
    %196 = vmatpush1.msra.mxu0 0.0
    %197 = vmatprep.subr.mxu0 0.0
    %198 = vmatpush1.msra.mxu0 0.0
    %199 = vmatprep.subr.mxu0 0.0
    %200 = vmatpush1.msra.mxu0 0.0
    %201 = vmatprep.subr.mxu0 0.0
    %202 = vmatpush1.msra.mxu0 0.0
    %203 = vmatprep.subr.mxu0 0.0
    %204 = vmatpush1.msra.mxu0 0.0
    %205 = vmatprep.subr.mxu0 0.0
    %206 = vmatpush1.msra.mxu0 0.0
    %207 = vmatprep.subr.mxu0 0.0
    %208 = vmatpush1.msra.mxu0 0.0
    %209 = vmatprep.subr.mxu0 0.0
    %210 = vmatpush1.msra.mxu0 0.0
    %211 = vmatprep.mubr.f32.mxu0 0.0
    %212 = vmatmul.mubr.f32.gmra.mrb[0].mxu0 %v136
    %v213 = vpop.f32.mrb[0].mxu0
    %v214 = vadd.f32 0.0, %v213
    %v215 = vpop.f32.mrb[0].mxu0
    %216 = vmatprep.mubr.f32.mxu0 0.0
    %217 = vmatmul.mubr.f32.gmra.mrb[0].mxu0 %v139
    %v218 = vpop.f32.mrb[0].mxu0
    %v219 = vadd.f32 0.0, %v218
    %v220 = vpop.f32.mrb[0].mxu0
    %221 = vmatprep.mubr.f32.mxu0 0.0
    %222 = vmatmul.mubr.f32.gmra.mrb[0].mxu0 %v142
    %v223 = vpop.f32.mrb[0].mxu0
    %v224 = vadd.f32 0.0, %v223
    %v225 = vpop.f32.mrb[0].mxu0
    %226 = vmatprep.mubr.f32.mxu0 0.0
    %227 = vmatmul.mubr.f32.gmra.mrb[0].mxu0 %v145
    %v228 = vpop.f32.mrb[0].mxu0
    %v229 = vadd.f32 0.0, %v228
    %v230 = vpop.f32.mrb[0].mxu0
    %231 = vdwg.mxu0
    %vm232 = vcmask 261120
    %233 = vst.msk [vmem:[#allocation5] sm:$0xff] %vm232, %v214
    %234 = vst.msk [vmem:[#allocation5 + $0x8] sm:$0xff] %vm232, %v219
    %235 = vst.msk [vmem:[#allocation5 + $0x10] sm:$0xff] %vm232, %v224
    %236 = vst.msk [vmem:[#allocation5 + $0x18] sm:$0xff] %vm232, %v229
    %s237 = scalar_lea.vmem [#allocation2], 16
    %v238 = vld [vmem:[%s237] sm:$0xff]
    %v239 = vld [vmem:[%s237 + $0x8] sm:$0xff]
    %240 = vmatprep.subr.mxu0 0.0
    %241 = vmatpush1.msra.mxu0 %v238
    %242 = vmatprep.subr.mxu0 0.0
    %243 = vmatpush1.msra.mxu0 %v239
    %244 = vmatprep.subr.mxu0 0.0
    %245 = vmatpush1.msra.mxu0 0.0
    %246 = vmatprep.subr.mxu0 0.0
    %247 = vmatpush1.msra.mxu0 0.0
    %248 = vmatprep.subr.mxu0 0.0
    %249 = vmatpush1.msra.mxu0 0.0
    %250 = vmatprep.subr.mxu0 0.0
    %251 = vmatpush1.msra.mxu0 0.0
    %252 = vmatprep.subr.mxu0 0.0
    %253 = vmatpush1.msra.mxu0 0.0
    %254 = vmatprep.subr.mxu0 0.0
    %255 = vmatpush1.msra.mxu0 0.0
    %256 = vmatprep.subr.mxu0 0.0
    %257 = vmatpush1.msra.mxu0 0.0
    %258 = vmatprep.subr.mxu0 0.0
    %259 = vmatpush1.msra.mxu0 0.0
    %260 = vmatprep.subr.mxu0 0.0
    %261 = vmatpush1.msra.mxu0 0.0
    %262 = vmatprep.subr.mxu0 0.0
    %263 = vmatpush1.msra.mxu0 0.0
    %264 = vmatprep.subr.mxu0 0.0
    %265 = vmatpush1.msra.mxu0 0.0
    %266 = vmatprep.subr.mxu0 0.0
    %267 = vmatpush1.msra.mxu0 0.0
    %268 = vmatprep.subr.mxu0 0.0
    %269 = vmatpush1.msra.mxu0 0.0
    %270 = vmatprep.subr.mxu0 0.0
    %271 = vmatpush1.msra.mxu0 0.0
    %272 = vmatprep.subr.mxu0 0.0
    %273 = vmatpush1.msra.mxu0 0.0
    %274 = vmatprep.subr.mxu0 0.0
    %275 = vmatpush1.msra.mxu0 0.0
    %276 = vmatprep.subr.mxu0 0.0
    %277 = vmatpush1.msra.mxu0 0.0
    %278 = vmatprep.subr.mxu0 0.0
    %279 = vmatpush1.msra.mxu0 0.0
    %280 = vmatprep.subr.mxu0 0.0
    %281 = vmatpush1.msra.mxu0 0.0
    %282 = vmatprep.subr.mxu0 0.0
    %283 = vmatpush1.msra.mxu0 0.0
    %284 = vmatprep.subr.mxu0 0.0
    %285 = vmatpush1.msra.mxu0 0.0
    %286 = vmatprep.subr.mxu0 0.0
    %287 = vmatpush1.msra.mxu0 0.0
    %288 = vmatprep.subr.mxu0 0.0
    %289 = vmatpush1.msra.mxu0 0.0
    %290 = vmatprep.subr.mxu0 0.0
    %291 = vmatpush1.msra.mxu0 0.0
    %292 = vmatprep.subr.mxu0 0.0
    %293 = vmatpush1.msra.mxu0 0.0
    %294 = vmatprep.subr.mxu0 0.0
    %295 = vmatpush1.msra.mxu0 0.0
    %296 = vmatprep.subr.mxu0 0.0
    %297 = vmatpush1.msra.mxu0 0.0
    %298 = vmatprep.subr.mxu0 0.0
    %299 = vmatpush1.msra.mxu0 0.0
    %300 = vmatprep.subr.mxu0 0.0
    %301 = vmatpush1.msra.mxu0 0.0
    %302 = vmatprep.subr.mxu0 0.0
    %303 = vmatpush1.msra.mxu0 0.0
    %304 = vmatprep.mubr.f32.mxu0 0.0
    %305 = vmatmul.mubr.f32.gmra.mrb[0].mxu0 %v39
    %v306 = vpop.f32.mrb[0].mxu0
    %v307 = vadd.f32 0.0, %v306
    %v308 = vpop.f32.mrb[0].mxu0
    %309 = vmatprep.mubr.f32.mxu0 0.0
    %310 = vmatmul.mubr.f32.gmra.mrb[0].mxu0 %v42
    %v311 = vpop.f32.mrb[0].mxu0
    %v312 = vadd.f32 0.0, %v311
    %v313 = vpop.f32.mrb[0].mxu0
    %314 = vmatprep.mubr.f32.mxu0 0.0
    %315 = vmatmul.mubr.f32.gmra.mrb[0].mxu0 %v45
    %v316 = vpop.f32.mrb[0].mxu0
    %v317 = vadd.f32 0.0, %v316
    %v318 = vpop.f32.mrb[0].mxu0
    %319 = vmatprep.mubr.f32.mxu0 0.0
    %320 = vmatmul.mubr.f32.gmra.mrb[0].mxu0 %v48
    %v321 = vpop.f32.mrb[0].mxu0
    %v322 = vadd.f32 0.0, %v321
    %v323 = vpop.f32.mrb[0].mxu0
    %324 = vdwg.mxu0
    %v326 = vsel %vm37, %v307, 0
    %v329 = vsel %vm37, %v312, 0
    %v332 = vsel %vm37, %v317, 0
    %v335 = vsel %vm37, %v322, 0
    %337 = vmatprep.subr.mxu0 0.0
    %338 = vmatpush1.msra.mxu0 %v33
    %339 = vmatprep.subr.mxu0 0.0
    %340 = vmatpush1.msra.mxu0 %v34
    %341 = vmatprep.subr.mxu0 0.0
    %342 = vmatpush1.msra.mxu0 0.0
    %343 = vmatprep.subr.mxu0 0.0
    %344 = vmatpush1.msra.mxu0 0.0
    %345 = vmatprep.subr.mxu0 0.0
    %346 = vmatpush1.msra.mxu0 0.0
    %347 = vmatprep.subr.mxu0 0.0
    %348 = vmatpush1.msra.mxu0 0.0
    %349 = vmatprep.subr.mxu0 0.0
    %350 = vmatpush1.msra.mxu0 0.0
    %351 = vmatprep.subr.mxu0 0.0
    %352 = vmatpush1.msra.mxu0 0.0
    %353 = vmatprep.subr.mxu0 0.0
    %354 = vmatpush1.msra.mxu0 0.0
    %355 = vmatprep.subr.mxu0 0.0
    %356 = vmatpush1.msra.mxu0 0.0
    %357 = vmatprep.subr.mxu0 0.0
    %358 = vmatpush1.msra.mxu0 0.0
    %359 = vmatprep.subr.mxu0 0.0
    %360 = vmatpush1.msra.mxu0 0.0
    %361 = vmatprep.subr.mxu0 0.0
    %362 = vmatpush1.msra.mxu0 0.0
    %363 = vmatprep.subr.mxu0 0.0
    %364 = vmatpush1.msra.mxu0 0.0
    %365 = vmatprep.subr.mxu0 0.0
    %366 = vmatpush1.msra.mxu0 0.0
    %367 = vmatprep.subr.mxu0 0.0
    %368 = vmatpush1.msra.mxu0 0.0
    %369 = vmatprep.subr.mxu0 0.0
    %370 = vmatpush1.msra.mxu0 0.0
    %371 = vmatprep.subr.mxu0 0.0
    %372 = vmatpush1.msra.mxu0 0.0
    %373 = vmatprep.subr.mxu0 0.0
    %374 = vmatpush1.msra.mxu0 0.0
    %375 = vmatprep.subr.mxu0 0.0
    %376 = vmatpush1.msra.mxu0 0.0
    %377 = vmatprep.subr.mxu0 0.0
    %378 = vmatpush1.msra.mxu0 0.0
    %379 = vmatprep.subr.mxu0 0.0
    %380 = vmatpush1.msra.mxu0 0.0
    %381 = vmatprep.subr.mxu0 0.0
    %382 = vmatpush1.msra.mxu0 0.0
    %383 = vmatprep.subr.mxu0 0.0
    %384 = vmatpush1.msra.mxu0 0.0
    %385 = vmatprep.subr.mxu0 0.0
    %386 = vmatpush1.msra.mxu0 0.0
    %387 = vmatprep.subr.mxu0 0.0
    %388 = vmatpush1.msra.mxu0 0.0
    %389 = vmatprep.subr.mxu0 0.0
    %390 = vmatpush1.msra.mxu0 0.0
    %391 = vmatprep.subr.mxu0 0.0
    %392 = vmatpush1.msra.mxu0 0.0
    %393 = vmatprep.subr.mxu0 0.0
    %394 = vmatpush1.msra.mxu0 0.0
    %395 = vmatprep.subr.mxu0 0.0
    %396 = vmatpush1.msra.mxu0 0.0
    %397 = vmatprep.subr.mxu0 0.0
    %398 = vmatpush1.msra.mxu0 0.0
    %399 = vmatprep.subr.mxu0 0.0
    %400 = vmatpush1.msra.mxu0 0.0
    %401 = vmatprep.mubr.f32.mxu0 0.0
    %402 = vmatmul.mubr.f32.gmra.mrb[0].mxu0 %v326
    %v403 = vpop.f32.mrb[0].mxu0
    %v404 = vadd.f32 0.0, %v403
    %v405 = vpop.f32.mrb[0].mxu0
    %406 = vmatprep.mubr.f32.mxu0 0.0
    %407 = vmatmul.mubr.f32.gmra.mrb[0].mxu0 %v329
    %v408 = vpop.f32.mrb[0].mxu0
    %v409 = vadd.f32 0.0, %v408
    %v410 = vpop.f32.mrb[0].mxu0
    %411 = vmatprep.mubr.f32.mxu0 0.0
    %412 = vmatmul.mubr.f32.gmra.mrb[0].mxu0 %v332
    %v413 = vpop.f32.mrb[0].mxu0
    %v414 = vadd.f32 0.0, %v413
    %v415 = vpop.f32.mrb[0].mxu0
    %416 = vmatprep.mubr.f32.mxu0 0.0
    %417 = vmatmul.mubr.f32.gmra.mrb[0].mxu0 %v335
    %v418 = vpop.f32.mrb[0].mxu0
    %v419 = vadd.f32 0.0, %v418
    %v420 = vpop.f32.mrb[0].mxu0
    %421 = vdwg.mxu0
    %s422 = scalar_lea.vmem [#allocation5], 32
    %423 = vst.msk [vmem:[%s422] sm:$0xff] %vm232, %v404
    %424 = vst.msk [vmem:[%s422 + $0x8] sm:$0xff] %vm232, %v409
    %425 = vst.msk [vmem:[%s422 + $0x10] sm:$0xff] %vm232, %v414
    %426 = vst.msk [vmem:[%s422 + $0x18] sm:$0xff] %vm232, %v419
    %s427 = scalar_lea.vmem [#allocation2], 32
    %v428 = vld [vmem:[%s427] sm:$0xff]
    %v429 = vld [vmem:[%s427 + $0x8] sm:$0xff]
    %430 = vmatprep.subr.mxu0 0.0
    %431 = vmatpush1.msra.mxu0 %v428
    %432 = vmatprep.subr.mxu0 0.0
    %433 = vmatpush1.msra.mxu0 %v429
    %434 = vmatprep.subr.mxu0 0.0
    %435 = vmatpush1.msra.mxu0 0.0
    %436 = vmatprep.subr.mxu0 0.0
    %437 = vmatpush1.msra.mxu0 0.0
    %438 = vmatprep.subr.mxu0 0.0
    %439 = vmatpush1.msra.mxu0 0.0
    %440 = vmatprep.subr.mxu0 0.0
    %441 = vmatpush1.msra.mxu0 0.0
    %442 = vmatprep.subr.mxu0 0.0
    %443 = vmatpush1.msra.mxu0 0.0
    %444 = vmatprep.subr.mxu0 0.0
    %445 = vmatpush1.msra.mxu0 0.0
    %446 = vmatprep.subr.mxu0 0.0
    %447 = vmatpush1.msra.mxu0 0.0
    %448 = vmatprep.subr.mxu0 0.0
    %449 = vmatpush1.msra.mxu0 0.0
    %450 = vmatprep.subr.mxu0 0.0
    %451 = vmatpush1.msra.mxu0 0.0
    %452 = vmatprep.subr.mxu0 0.0
    %453 = vmatpush1.msra.mxu0 0.0
    %454 = vmatprep.subr.mxu0 0.0
    %455 = vmatpush1.msra.mxu0 0.0
    %456 = vmatprep.subr.mxu0 0.0
    %457 = vmatpush1.msra.mxu0 0.0
    %458 = vmatprep.subr.mxu0 0.0
    %459 = vmatpush1.msra.mxu0 0.0
    %460 = vmatprep.subr.mxu0 0.0
    %461 = vmatpush1.msra.mxu0 0.0
    %462 = vmatprep.subr.mxu0 0.0
    %463 = vmatpush1.msra.mxu0 0.0
    %464 = vmatprep.subr.mxu0 0.0
    %465 = vmatpush1.msra.mxu0 0.0
    %466 = vmatprep.subr.mxu0 0.0
    %467 = vmatpush1.msra.mxu0 0.0
    %468 = vmatprep.subr.mxu0 0.0
    %469 = vmatpush1.msra.mxu0 0.0
    %470 = vmatprep.subr.mxu0 0.0
    %471 = vmatpush1.msra.mxu0 0.0
    %472 = vmatprep.subr.mxu0 0.0
    %473 = vmatpush1.msra.mxu0 0.0
    %474 = vmatprep.subr.mxu0 0.0
    %475 = vmatpush1.msra.mxu0 0.0
    %476 = vmatprep.subr.mxu0 0.0
    %477 = vmatpush1.msra.mxu0 0.0
    %478 = vmatprep.subr.mxu0 0.0
    %479 = vmatpush1.msra.mxu0 0.0
    %480 = vmatprep.subr.mxu0 0.0
    %481 = vmatpush1.msra.mxu0 0.0
    %482 = vmatprep.subr.mxu0 0.0
    %483 = vmatpush1.msra.mxu0 0.0
    %484 = vmatprep.subr.mxu0 0.0
    %485 = vmatpush1.msra.mxu0 0.0
    %486 = vmatprep.subr.mxu0 0.0
    %487 = vmatpush1.msra.mxu0 0.0
    %488 = vmatprep.subr.mxu0 0.0
    %489 = vmatpush1.msra.mxu0 0.0
    %490 = vmatprep.subr.mxu0 0.0
    %491 = vmatpush1.msra.mxu0 0.0
    %492 = vmatprep.subr.mxu0 0.0
    %493 = vmatpush1.msra.mxu0 0.0
    %494 = vmatprep.mubr.f32.mxu0 0.0
    %495 = vmatmul.mubr.f32.gmra.mrb[0].mxu0 %v39
    %v496 = vpop.f32.mrb[0].mxu0
    %v497 = vadd.f32 0.0, %v496
    %v498 = vpop.f32.mrb[0].mxu0
    %499 = vmatprep.mubr.f32.mxu0 0.0
    %500 = vmatmul.mubr.f32.gmra.mrb[0].mxu0 %v42
    %v501 = vpop.f32.mrb[0].mxu0
    %v502 = vadd.f32 0.0, %v501
    %v503 = vpop.f32.mrb[0].mxu0
    %504 = vmatprep.mubr.f32.mxu0 0.0
    %505 = vmatmul.mubr.f32.gmra.mrb[0].mxu0 %v45
    %v506 = vpop.f32.mrb[0].mxu0
    %v507 = vadd.f32 0.0, %v506
    %v508 = vpop.f32.mrb[0].mxu0
    %509 = vmatprep.mubr.f32.mxu0 0.0
    %510 = vmatmul.mubr.f32.gmra.mrb[0].mxu0 %v48
    %v511 = vpop.f32.mrb[0].mxu0
    %v512 = vadd.f32 0.0, %v511
    %v513 = vpop.f32.mrb[0].mxu0
    %514 = vdwg.mxu0
    %v516 = vsel %vm37, %v497, 0
    %v519 = vsel %vm37, %v502, 0
    %v522 = vsel %vm37, %v507, 0
    %v525 = vsel %vm37, %v512, 0
    %527 = vmatprep.subr.mxu0 0.0
    %528 = vmatpush1.msra.mxu0 %v33
    %529 = vmatprep.subr.mxu0 0.0
    %530 = vmatpush1.msra.mxu0 %v34
    %531 = vmatprep.subr.mxu0 0.0
    %532 = vmatpush1.msra.mxu0 0.0
    %533 = vmatprep.subr.mxu0 0.0
    %534 = vmatpush1.msra.mxu0 0.0
    %535 = vmatprep.subr.mxu0 0.0
    %536 = vmatpush1.msra.mxu0 0.0
    %537 = vmatprep.subr.mxu0 0.0
    %538 = vmatpush1.msra.mxu0 0.0
    %539 = vmatprep.subr.mxu0 0.0
    %540 = vmatpush1.msra.mxu0 0.0
    %541 = vmatprep.subr.mxu0 0.0
    %542 = vmatpush1.msra.mxu0 0.0
    %543 = vmatprep.subr.mxu0 0.0
    %544 = vmatpush1.msra.mxu0 0.0
    %545 = vmatprep.subr.mxu0 0.0
    %546 = vmatpush1.msra.mxu0 0.0
    %547 = vmatprep.subr.mxu0 0.0
    %548 = vmatpush1.msra.mxu0 0.0
    %549 = vmatprep.subr.mxu0 0.0
    %550 = vmatpush1.msra.mxu0 0.0
    %551 = vmatprep.subr.mxu0 0.0
    %552 = vmatpush1.msra.mxu0 0.0
    %553 = vmatprep.subr.mxu0 0.0
    %554 = vmatpush1.msra.mxu0 0.0
    %555 = vmatprep.subr.mxu0 0.0
    %556 = vmatpush1.msra.mxu0 0.0
    %557 = vmatprep.subr.mxu0 0.0
    %558 = vmatpush1.msra.mxu0 0.0
    %559 = vmatprep.subr.mxu0 0.0
    %560 = vmatpush1.msra.mxu0 0.0
    %561 = vmatprep.subr.mxu0 0.0
    %562 = vmatpush1.msra.mxu0 0.0
    %563 = vmatprep.subr.mxu0 0.0
    %564 = vmatpush1.msra.mxu0 0.0
    %565 = vmatprep.subr.mxu0 0.0
    %566 = vmatpush1.msra.mxu0 0.0
    %567 = vmatprep.subr.mxu0 0.0
    %568 = vmatpush1.msra.mxu0 0.0
    %569 = vmatprep.subr.mxu0 0.0
    %570 = vmatpush1.msra.mxu0 0.0
    %571 = vmatprep.subr.mxu0 0.0
    %572 = vmatpush1.msra.mxu0 0.0
    %573 = vmatprep.subr.mxu0 0.0
    %574 = vmatpush1.msra.mxu0 0.0
    %575 = vmatprep.subr.mxu0 0.0
    %576 = vmatpush1.msra.mxu0 0.0
    %577 = vmatprep.subr.mxu0 0.0
    %578 = vmatpush1.msra.mxu0 0.0
    %579 = vmatprep.subr.mxu0 0.0
    %580 = vmatpush1.msra.mxu0 0.0
    %581 = vmatprep.subr.mxu0 0.0
    %582 = vmatpush1.msra.mxu0 0.0
    %583 = vmatprep.subr.mxu0 0.0
    %584 = vmatpush1.msra.mxu0 0.0
    %585 = vmatprep.subr.mxu0 0.0
    %586 = vmatpush1.msra.mxu0 0.0
    %587 = vmatprep.subr.mxu0 0.0
    %588 = vmatpush1.msra.mxu0 0.0
    %589 = vmatprep.subr.mxu0 0.0
    %590 = vmatpush1.msra.mxu0 0.0
    %591 = vmatprep.mubr.f32.mxu0 0.0
    %592 = vmatmul.mubr.f32.gmra.mrb[0].mxu0 %v516
    %v593 = vpop.f32.mrb[0].mxu0
    %v594 = vadd.f32 0.0, %v593
    %v595 = vpop.f32.mrb[0].mxu0
    %596 = vmatprep.mubr.f32.mxu0 0.0
    %597 = vmatmul.mubr.f32.gmra.mrb[0].mxu0 %v519
    %v598 = vpop.f32.mrb[0].mxu0
    %v599 = vadd.f32 0.0, %v598
    %v600 = vpop.f32.mrb[0].mxu0
    %601 = vmatprep.mubr.f32.mxu0 0.0
    %602 = vmatmul.mubr.f32.gmra.mrb[0].mxu0 %v522
    %v603 = vpop.f32.mrb[0].mxu0
    %v604 = vadd.f32 0.0, %v603
    %v605 = vpop.f32.mrb[0].mxu0
    %606 = vmatprep.mubr.f32.mxu0 0.0
    %607 = vmatmul.mubr.f32.gmra.mrb[0].mxu0 %v525
    %v608 = vpop.f32.mrb[0].mxu0
    %v609 = vadd.f32 0.0, %v608
    %v610 = vpop.f32.mrb[0].mxu0
    %611 = vdwg.mxu0
    %s612 = scalar_lea.vmem [#allocation5], 64
    %613 = vst.msk [vmem:[%s612] sm:$0xff] %vm232, %v594
    %614 = vst.msk [vmem:[%s612 + $0x8] sm:$0xff] %vm232, %v599
    %615 = vst.msk [vmem:[%s612 + $0x10] sm:$0xff] %vm232, %v604
    %616 = vst.msk [vmem:[%s612 + $0x18] sm:$0xff] %vm232, %v609
    %s617 = scalar_lea.vmem [#allocation2], 48
    %v618 = vld [vmem:[%s617] sm:$0xff]
    %v619 = vld [vmem:[%s617 + $0x8] sm:$0xff]
    %620 = vmatprep.subr.mxu0 0.0
    %621 = vmatpush1.msra.mxu0 %v618
    %622 = vmatprep.subr.mxu0 0.0
    %623 = vmatpush1.msra.mxu0 %v619
    %624 = vmatprep.subr.mxu0 0.0
    %625 = vmatpush1.msra.mxu0 0.0
    %626 = vmatprep.subr.mxu0 0.0
    %627 = vmatpush1.msra.mxu0 0.0
    %628 = vmatprep.subr.mxu0 0.0
    %629 = vmatpush1.msra.mxu0 0.0
    %630 = vmatprep.subr.mxu0 0.0
    %631 = vmatpush1.msra.mxu0 0.0
    %632 = vmatprep.subr.mxu0 0.0
    %633 = vmatpush1.msra.mxu0 0.0
    %634 = vmatprep.subr.mxu0 0.0
    %635 = vmatpush1.msra.mxu0 0.0
    %636 = vmatprep.subr.mxu0 0.0
    %637 = vmatpush1.msra.mxu0 0.0
    %638 = vmatprep.subr.mxu0 0.0
    %639 = vmatpush1.msra.mxu0 0.0
    %640 = vmatprep.subr.mxu0 0.0
    %641 = vmatpush1.msra.mxu0 0.0
    %642 = vmatprep.subr.mxu0 0.0
    %643 = vmatpush1.msra.mxu0 0.0
    %644 = vmatprep.subr.mxu0 0.0
    %645 = vmatpush1.msra.mxu0 0.0
    %646 = vmatprep.subr.mxu0 0.0
    %647 = vmatpush1.msra.mxu0 0.0
    %648 = vmatprep.subr.mxu0 0.0
    %649 = vmatpush1.msra.mxu0 0.0
    %650 = vmatprep.subr.mxu0 0.0
    %651 = vmatpush1.msra.mxu0 0.0
    %652 = vmatprep.subr.mxu0 0.0
    %653 = vmatpush1.msra.mxu0 0.0
    %654 = vmatprep.subr.mxu0 0.0
    %655 = vmatpush1.msra.mxu0 0.0
    %656 = vmatprep.subr.mxu0 0.0
    %657 = vmatpush1.msra.mxu0 0.0
    %658 = vmatprep.subr.mxu0 0.0
    %659 = vmatpush1.msra.mxu0 0.0
    %660 = vmatprep.subr.mxu0 0.0
    %661 = vmatpush1.msra.mxu0 0.0
    %662 = vmatprep.subr.mxu0 0.0
    %663 = vmatpush1.msra.mxu0 0.0
    %664 = vmatprep.subr.mxu0 0.0
    %665 = vmatpush1.msra.mxu0 0.0
    %666 = vmatprep.subr.mxu0 0.0
    %667 = vmatpush1.msra.mxu0 0.0
    %668 = vmatprep.subr.mxu0 0.0
    %669 = vmatpush1.msra.mxu0 0.0
    %670 = vmatprep.subr.mxu0 0.0
    %671 = vmatpush1.msra.mxu0 0.0
    %672 = vmatprep.subr.mxu0 0.0
    %673 = vmatpush1.msra.mxu0 0.0
    %674 = vmatprep.subr.mxu0 0.0
    %675 = vmatpush1.msra.mxu0 0.0
    %676 = vmatprep.subr.mxu0 0.0
    %677 = vmatpush1.msra.mxu0 0.0
    %678 = vmatprep.subr.mxu0 0.0
    %679 = vmatpush1.msra.mxu0 0.0
    %680 = vmatprep.subr.mxu0 0.0
    %681 = vmatpush1.msra.mxu0 0.0
    %682 = vmatprep.subr.mxu0 0.0
    %683 = vmatpush1.msra.mxu0 0.0
    %684 = vmatprep.mubr.f32.mxu0 0.0
    %685 = vmatmul.mubr.f32.gmra.mrb[0].mxu0 %v39
    %v686 = vpop.f32.mrb[0].mxu0
    %v687 = vadd.f32 0.0, %v686
    %v688 = vpop.f32.mrb[0].mxu0
    %689 = vmatprep.mubr.f32.mxu0 0.0
    %690 = vmatmul.mubr.f32.gmra.mrb[0].mxu0 %v42
    %v691 = vpop.f32.mrb[0].mxu0
    %v692 = vadd.f32 0.0, %v691
    %v693 = vpop.f32.mrb[0].mxu0
    %694 = vmatprep.mubr.f32.mxu0 0.0
    %695 = vmatmul.mubr.f32.gmra.mrb[0].mxu0 %v45
    %v696 = vpop.f32.mrb[0].mxu0
    %v697 = vadd.f32 0.0, %v696
    %v698 = vpop.f32.mrb[0].mxu0
    %699 = vmatprep.mubr.f32.mxu0 0.0
    %700 = vmatmul.mubr.f32.gmra.mrb[0].mxu0 %v48
    %v701 = vpop.f32.mrb[0].mxu0
    %v702 = vadd.f32 0.0, %v701
    %v703 = vpop.f32.mrb[0].mxu0
    %704 = vdwg.mxu0
    %v706 = vsel %vm37, %v687, 0
    %v709 = vsel %vm37, %v692, 0
    %v712 = vsel %vm37, %v697, 0
    %v715 = vsel %vm37, %v702, 0
    %717 = vmatprep.subr.mxu0 0.0
    %718 = vmatpush1.msra.mxu0 %v33
    %719 = vmatprep.subr.mxu0 0.0
    %720 = vmatpush1.msra.mxu0 %v34
    %721 = vmatprep.subr.mxu0 0.0
    %722 = vmatpush1.msra.mxu0 0.0
    %723 = vmatprep.subr.mxu0 0.0
    %724 = vmatpush1.msra.mxu0 0.0
    %725 = vmatprep.subr.mxu0 0.0
    %726 = vmatpush1.msra.mxu0 0.0
    %727 = vmatprep.subr.mxu0 0.0
    %728 = vmatpush1.msra.mxu0 0.0
    %729 = vmatprep.subr.mxu0 0.0
    %730 = vmatpush1.msra.mxu0 0.0
    %731 = vmatprep.subr.mxu0 0.0
    %732 = vmatpush1.msra.mxu0 0.0
    %733 = vmatprep.subr.mxu0 0.0
    %734 = vmatpush1.msra.mxu0 0.0
    %735 = vmatprep.subr.mxu0 0.0
    %736 = vmatpush1.msra.mxu0 0.0
    %737 = vmatprep.subr.mxu0 0.0
    %738 = vmatpush1.msra.mxu0 0.0
    %739 = vmatprep.subr.mxu0 0.0
    %740 = vmatpush1.msra.mxu0 0.0
    %741 = vmatprep.subr.mxu0 0.0
    %742 = vmatpush1.msra.mxu0 0.0
    %743 = vmatprep.subr.mxu0 0.0
    %744 = vmatpush1.msra.mxu0 0.0
    %745 = vmatprep.subr.mxu0 0.0
    %746 = vmatpush1.msra.mxu0 0.0
    %747 = vmatprep.subr.mxu0 0.0
    %748 = vmatpush1.msra.mxu0 0.0
    %749 = vmatprep.subr.mxu0 0.0
    %750 = vmatpush1.msra.mxu0 0.0
    %751 = vmatprep.subr.mxu0 0.0
    %752 = vmatpush1.msra.mxu0 0.0
    %753 = vmatprep.subr.mxu0 0.0
    %754 = vmatpush1.msra.mxu0 0.0
    %755 = vmatprep.subr.mxu0 0.0
    %756 = vmatpush1.msra.mxu0 0.0
    %757 = vmatprep.subr.mxu0 0.0
    %758 = vmatpush1.msra.mxu0 0.0
    %759 = vmatprep.subr.mxu0 0.0
    %760 = vmatpush1.msra.mxu0 0.0
    %761 = vmatprep.subr.mxu0 0.0
    %762 = vmatpush1.msra.mxu0 0.0
    %763 = vmatprep.subr.mxu0 0.0
    %764 = vmatpush1.msra.mxu0 0.0
    %765 = vmatprep.subr.mxu0 0.0
    %766 = vmatpush1.msra.mxu0 0.0
    %767 = vmatprep.subr.mxu0 0.0
    %768 = vmatpush1.msra.mxu0 0.0
    %769 = vmatprep.subr.mxu0 0.0
    %770 = vmatpush1.msra.mxu0 0.0
    %771 = vmatprep.subr.mxu0 0.0
    %772 = vmatpush1.msra.mxu0 0.0
    %773 = vmatprep.subr.mxu0 0.0
    %774 = vmatpush1.msra.mxu0 0.0
    %775 = vmatprep.subr.mxu0 0.0
    %776 = vmatpush1.msra.mxu0 0.0
    %777 = vmatprep.subr.mxu0 0.0
    %778 = vmatpush1.msra.mxu0 0.0
    %779 = vmatprep.subr.mxu0 0.0
    %780 = vmatpush1.msra.mxu0 0.0
    %781 = vmatprep.mubr.f32.mxu0 0.0
    %782 = vmatmul.mubr.f32.gmra.mrb[0].mxu0 %v706
    %v783 = vpop.f32.mrb[0].mxu0
    %v784 = vadd.f32 0.0, %v783
    %v785 = vpop.f32.mrb[0].mxu0
    %786 = vmatprep.mubr.f32.mxu0 0.0
    %787 = vmatmul.mubr.f32.gmra.mrb[0].mxu0 %v709
    %v788 = vpop.f32.mrb[0].mxu0
    %v789 = vadd.f32 0.0, %v788
    %v790 = vpop.f32.mrb[0].mxu0
    %791 = vmatprep.mubr.f32.mxu0 0.0
    %792 = vmatmul.mubr.f32.gmra.mrb[0].mxu0 %v712
    %v793 = vpop.f32.mrb[0].mxu0
    %v794 = vadd.f32 0.0, %v793
    %v795 = vpop.f32.mrb[0].mxu0
    %796 = vmatprep.mubr.f32.mxu0 0.0
    %797 = vmatmul.mubr.f32.gmra.mrb[0].mxu0 %v715
    %v798 = vpop.f32.mrb[0].mxu0
    %v799 = vadd.f32 0.0, %v798
    %v800 = vpop.f32.mrb[0].mxu0
    %801 = vdwg.mxu0
    %s802 = scalar_lea.vmem [#allocation5], 96
    %803 = vst.msk [vmem:[%s802] sm:$0xff] %vm232, %v784
    %804 = vst.msk [vmem:[%s802 + $0x8] sm:$0xff] %vm232, %v789
    %805 = vst.msk [vmem:[%s802 + $0x10] sm:$0xff] %vm232, %v794
    %806 = vst.msk [vmem:[%s802 + $0x18] sm:$0xff] %vm232, %v799
    %s807 = scalar_lea.vmem [#allocation2], 64
    %v808 = vld [vmem:[%s807] sm:$0xff]
    %v809 = vld [vmem:[%s807 + $0x8] sm:$0xff]
    %810 = vmatprep.subr.mxu0 0.0
    %811 = vmatpush1.msra.mxu0 %v808
    %812 = vmatprep.subr.mxu0 0.0
    %813 = vmatpush1.msra.mxu0 %v809
    %814 = vmatprep.subr.mxu0 0.0
    %815 = vmatpush1.msra.mxu0 0.0
    %816 = vmatprep.subr.mxu0 0.0
    %817 = vmatpush1.msra.mxu0 0.0
    %818 = vmatprep.subr.mxu0 0.0
    %819 = vmatpush1.msra.mxu0 0.0
    %820 = vmatprep.subr.mxu0 0.0
    %821 = vmatpush1.msra.mxu0 0.0
    %822 = vmatprep.subr.mxu0 0.0
    %823 = vmatpush1.msra.mxu0 0.0
    %824 = vmatprep.subr.mxu0 0.0
    %825 = vmatpush1.msra.mxu0 0.0
    %826 = vmatprep.subr.mxu0 0.0
    %827 = vmatpush1.msra.mxu0 0.0
    %828 = vmatprep.subr.mxu0 0.0
    %829 = vmatpush1.msra.mxu0 0.0
    %830 = vmatprep.subr.mxu0 0.0
    %831 = vmatpush1.msra.mxu0 0.0
    %832 = vmatprep.subr.mxu0 0.0
    %833 = vmatpush1.msra.mxu0 0.0
    %834 = vmatprep.subr.mxu0 0.0
    %835 = vmatpush1.msra.mxu0 0.0
    %836 = vmatprep.subr.mxu0 0.0
    %837 = vmatpush1.msra.mxu0 0.0
    %838 = vmatprep.subr.mxu0 0.0
    %839 = vmatpush1.msra.mxu0 0.0
    %840 = vmatprep.subr.mxu0 0.0
    %841 = vmatpush1.msra.mxu0 0.0
    %842 = vmatprep.subr.mxu0 0.0
    %843 = vmatpush1.msra.mxu0 0.0
    %844 = vmatprep.subr.mxu0 0.0
    %845 = vmatpush1.msra.mxu0 0.0
    %846 = vmatprep.subr.mxu0 0.0
    %847 = vmatpush1.msra.mxu0 0.0
    %848 = vmatprep.subr.mxu0 0.0
    %849 = vmatpush1.msra.mxu0 0.0
    %850 = vmatprep.subr.mxu0 0.0
    %851 = vmatpush1.msra.mxu0 0.0
    %852 = vmatprep.subr.mxu0 0.0
    %853 = vmatpush1.msra.mxu0 0.0
    %854 = vmatprep.subr.mxu0 0.0
    %855 = vmatpush1.msra.mxu0 0.0
    %856 = vmatprep.subr.mxu0 0.0
    %857 = vmatpush1.msra.mxu0 0.0
    %858 = vmatprep.subr.mxu0 0.0
    %859 = vmatpush1.msra.mxu0 0.0
    %860 = vmatprep.subr.mxu0 0.0
    %861 = vmatpush1.msra.mxu0 0.0
    %862 = vmatprep.subr.mxu0 0.0
    %863 = vmatpush1.msra.mxu0 0.0
    %864 = vmatprep.subr.mxu0 0.0
    %865 = vmatpush1.msra.mxu0 0.0
    %866 = vmatprep.subr.mxu0 0.0
    %867 = vmatpush1.msra.mxu0 0.0
    %868 = vmatprep.subr.mxu0 0.0
    %869 = vmatpush1.msra.mxu0 0.0
    %870 = vmatprep.subr.mxu0 0.0
    %871 = vmatpush1.msra.mxu0 0.0
    %872 = vmatprep.subr.mxu0 0.0
    %873 = vmatpush1.msra.mxu0 0.0
    %874 = vmatprep.mubr.f32.mxu0 0.0
    %875 = vmatmul.mubr.f32.gmra.mrb[0].mxu0 %v39
    %v876 = vpop.f32.mrb[0].mxu0
    %v877 = vadd.f32 0.0, %v876
    %v878 = vpop.f32.mrb[0].mxu0
    %879 = vmatprep.mubr.f32.mxu0 0.0
    %880 = vmatmul.mubr.f32.gmra.mrb[0].mxu0 %v42
    %v881 = vpop.f32.mrb[0].mxu0
    %v882 = vadd.f32 0.0, %v881
    %v883 = vpop.f32.mrb[0].mxu0
    %884 = vmatprep.mubr.f32.mxu0 0.0
    %885 = vmatmul.mubr.f32.gmra.mrb[0].mxu0 %v45
    %v886 = vpop.f32.mrb[0].mxu0
    %v887 = vadd.f32 0.0, %v886
    %v888 = vpop.f32.mrb[0].mxu0
    %889 = vmatprep.mubr.f32.mxu0 0.0
    %890 = vmatmul.mubr.f32.gmra.mrb[0].mxu0 %v48
    %v891 = vpop.f32.mrb[0].mxu0
    %v892 = vadd.f32 0.0, %v891
    %v893 = vpop.f32.mrb[0].mxu0
    %894 = vdwg.mxu0
    %v896 = vsel %vm37, %v877, 0
    %v899 = vsel %vm37, %v882, 0
    %v902 = vsel %vm37, %v887, 0
    %v905 = vsel %vm37, %v892, 0
    %907 = vmatprep.subr.mxu0 0.0
    %908 = vmatpush1.msra.mxu0 %v33
    %909 = vmatprep.subr.mxu0 0.0
    %910 = vmatpush1.msra.mxu0 %v34
    %911 = vmatprep.subr.mxu0 0.0
    %912 = vmatpush1.msra.mxu0 0.0
    %913 = vmatprep.subr.mxu0 0.0
    %914 = vmatpush1.msra.mxu0 0.0
    %915 = vmatprep.subr.mxu0 0.0
    %916 = vmatpush1.msra.mxu0 0.0
    %917 = vmatprep.subr.mxu0 0.0
    %918 = vmatpush1.msra.mxu0 0.0
    %919 = vmatprep.subr.mxu0 0.0
    %920 = vmatpush1.msra.mxu0 0.0
    %921 = vmatprep.subr.mxu0 0.0
    %922 = vmatpush1.msra.mxu0 0.0
    %923 = vmatprep.subr.mxu0 0.0
    %924 = vmatpush1.msra.mxu0 0.0
    %925 = vmatprep.subr.mxu0 0.0
    %926 = vmatpush1.msra.mxu0 0.0
    %927 = vmatprep.subr.mxu0 0.0
    %928 = vmatpush1.msra.mxu0 0.0
    %929 = vmatprep.subr.mxu0 0.0
    %930 = vmatpush1.msra.mxu0 0.0
    %931 = vmatprep.subr.mxu0 0.0
    %932 = vmatpush1.msra.mxu0 0.0
    %933 = vmatprep.subr.mxu0 0.0
    %934 = vmatpush1.msra.mxu0 0.0
    %935 = vmatprep.subr.mxu0 0.0
    %936 = vmatpush1.msra.mxu0 0.0
    %937 = vmatprep.subr.mxu0 0.0
    %938 = vmatpush1.msra.mxu0 0.0
    %939 = vmatprep.subr.mxu0 0.0
    %940 = vmatpush1.msra.mxu0 0.0
    %941 = vmatprep.subr.mxu0 0.0
    %942 = vmatpush1.msra.mxu0 0.0
    %943 = vmatprep.subr.mxu0 0.0
    %944 = vmatpush1.msra.mxu0 0.0
    %945 = vmatprep.subr.mxu0 0.0
    %946 = vmatpush1.msra.mxu0 0.0
    %947 = vmatprep.subr.mxu0 0.0
    %948 = vmatpush1.msra.mxu0 0.0
    %949 = vmatprep.subr.mxu0 0.0
    %950 = vmatpush1.msra.mxu0 0.0
    %951 = vmatprep.subr.mxu0 0.0
    %952 = vmatpush1.msra.mxu0 0.0
    %953 = vmatprep.subr.mxu0 0.0
    %954 = vmatpush1.msra.mxu0 0.0
    %955 = vmatprep.subr.mxu0 0.0
    %956 = vmatpush1.msra.mxu0 0.0
    %957 = vmatprep.subr.mxu0 0.0
    %958 = vmatpush1.msra.mxu0 0.0
    %959 = vmatprep.subr.mxu0 0.0
    %960 = vmatpush1.msra.mxu0 0.0
    %961 = vmatprep.subr.mxu0 0.0
    %962 = vmatpush1.msra.mxu0 0.0
    %963 = vmatprep.subr.mxu0 0.0
    %964 = vmatpush1.msra.mxu0 0.0
    %965 = vmatprep.subr.mxu0 0.0
    %966 = vmatpush1.msra.mxu0 0.0
    %967 = vmatprep.subr.mxu0 0.0
    %968 = vmatpush1.msra.mxu0 0.0
    %969 = vmatprep.subr.mxu0 0.0
    %970 = vmatpush1.msra.mxu0 0.0
    %971 = vmatprep.mubr.f32.mxu0 0.0
    %972 = vmatmul.mubr.f32.gmra.mrb[0].mxu0 %v896
    %v973 = vpop.f32.mrb[0].mxu0
    %v974 = vadd.f32 0.0, %v973
    %v975 = vpop.f32.mrb[0].mxu0
    %976 = vmatprep.mubr.f32.mxu0 0.0
    %977 = vmatmul.mubr.f32.gmra.mrb[0].mxu0 %v899
    %v978 = vpop.f32.mrb[0].mxu0
    %v979 = vadd.f32 0.0, %v978
    %v980 = vpop.f32.mrb[0].mxu0
    %981 = vmatprep.mubr.f32.mxu0 0.0
    %982 = vmatmul.mubr.f32.gmra.mrb[0].mxu0 %v902
    %v983 = vpop.f32.mrb[0].mxu0
    %v984 = vadd.f32 0.0, %v983
    %v985 = vpop.f32.mrb[0].mxu0
    %986 = vmatprep.mubr.f32.mxu0 0.0
    %987 = vmatmul.mubr.f32.gmra.mrb[0].mxu0 %v905
    %v988 = vpop.f32.mrb[0].mxu0
    %v989 = vadd.f32 0.0, %v988
    %v990 = vpop.f32.mrb[0].mxu0
    %991 = vdwg.mxu0
    %s992 = scalar_lea.vmem [#allocation5], 128
    %993 = vst.msk [vmem:[%s992] sm:$0xff] %vm232, %v974
    %994 = vst.msk [vmem:[%s992 + $0x8] sm:$0xff] %vm232, %v979
    %995 = vst.msk [vmem:[%s992 + $0x10] sm:$0xff] %vm232, %v984
    %996 = vst.msk [vmem:[%s992 + $0x18] sm:$0xff] %vm232, %v989
    %s997 = scalar_lea.vmem [#allocation2], 80
    %v998 = vld [vmem:[%s997] sm:$0xff]
    %v999 = vld [vmem:[%s997 + $0x8] sm:$0xff]
    %1000 = vmatprep.subr.mxu0 0.0
    %1001 = vmatpush1.msra.mxu0 %v998
    %1002 = vmatprep.subr.mxu0 0.0
    %1003 = vmatpush1.msra.mxu0 %v999
    %1004 = vmatprep.subr.mxu0 0.0
    %1005 = vmatpush1.msra.mxu0 0.0
    %1006 = vmatprep.subr.mxu0 0.0
    %1007 = vmatpush1.msra.mxu0 0.0
    %1008 = vmatprep.subr.mxu0 0.0
    %1009 = vmatpush1.msra.mxu0 0.0
    %1010 = vmatprep.subr.mxu0 0.0
    %1011 = vmatpush1.msra.mxu0 0.0
    %1012 = vmatprep.subr.mxu0 0.0
    %1013 = vmatpush1.msra.mxu0 0.0
    %1014 = vmatprep.subr.mxu0 0.0
    %1015 = vmatpush1.msra.mxu0 0.0
    %1016 = vmatprep.subr.mxu0 0.0
    %1017 = vmatpush1.msra.mxu0 0.0
    %1018 = vmatprep.subr.mxu0 0.0
    %1019 = vmatpush1.msra.mxu0 0.0
    %1020 = vmatprep.subr.mxu0 0.0
    %1021 = vmatpush1.msra.mxu0 0.0
    %1022 = vmatprep.subr.mxu0 0.0
    %1023 = vmatpush1.msra.mxu0 0.0
    %1024 = vmatprep.subr.mxu0 0.0
    %1025 = vmatpush1.msra.mxu0 0.0
    %1026 = vmatprep.subr.mxu0 0.0
    %1027 = vmatpush1.msra.mxu0 0.0
    %1028 = vmatprep.subr.mxu0 0.0
    %1029 = vmatpush1.msra.mxu0 0.0
    %1030 = vmatprep.subr.mxu0 0.0
    %1031 = vmatpush1.msra.mxu0 0.0
    %1032 = vmatprep.subr.mxu0 0.0
    %1033 = vmatpush1.msra.mxu0 0.0
    %1034 = vmatprep.subr.mxu0 0.0
    %1035 = vmatpush1.msra.mxu0 0.0
    %1036 = vmatprep.subr.mxu0 0.0
    %1037 = vmatpush1.msra.mxu0 0.0
    %1038 = vmatprep.subr.mxu0 0.0
    %1039 = vmatpush1.msra.mxu0 0.0
    %1040 = vmatprep.subr.mxu0 0.0
    %1041 = vmatpush1.msra.mxu0 0.0
    %1042 = vmatprep.subr.mxu0 0.0
    %1043 = vmatpush1.msra.mxu0 0.0
    %1044 = vmatprep.subr.mxu0 0.0
    %1045 = vmatpush1.msra.mxu0 0.0
    %1046 = vmatprep.subr.mxu0 0.0
    %1047 = vmatpush1.msra.mxu0 0.0
    %1048 = vmatprep.subr.mxu0 0.0
    %1049 = vmatpush1.msra.mxu0 0.0
    %1050 = vmatprep.subr.mxu0 0.0
    %1051 = vmatpush1.msra.mxu0 0.0
    %1052 = vmatprep.subr.mxu0 0.0
    %1053 = vmatpush1.msra.mxu0 0.0
    %1054 = vmatprep.subr.mxu0 0.0
    %1055 = vmatpush1.msra.mxu0 0.0
    %1056 = vmatprep.subr.mxu0 0.0
    %1057 = vmatpush1.msra.mxu0 0.0
    %1058 = vmatprep.subr.mxu0 0.0
    %1059 = vmatpush1.msra.mxu0 0.0
    %1060 = vmatprep.subr.mxu0 0.0
    %1061 = vmatpush1.msra.mxu0 0.0
    %1062 = vmatprep.subr.mxu0 0.0
    %1063 = vmatpush1.msra.mxu0 0.0
    %1064 = vmatprep.mubr.f32.mxu0 0.0
    %1065 = vmatmul.mubr.f32.gmra.mrb[0].mxu0 %v39
    %v1066 = vpop.f32.mrb[0].mxu0
    %v1067 = vadd.f32 0.0, %v1066
    %v1068 = vpop.f32.mrb[0].mxu0
    %1069 = vmatprep.mubr.f32.mxu0 0.0
    %1070 = vmatmul.mubr.f32.gmra.mrb[0].mxu0 %v42
    %v1071 = vpop.f32.mrb[0].mxu0
    %v1072 = vadd.f32 0.0, %v1071
    %v1073 = vpop.f32.mrb[0].mxu0
    %1074 = vmatprep.mubr.f32.mxu0 0.0
    %1075 = vmatmul.mubr.f32.gmra.mrb[0].mxu0 %v45
    %v1076 = vpop.f32.mrb[0].mxu0
    %v1077 = vadd.f32 0.0, %v1076
    %v1078 = vpop.f32.mrb[0].mxu0
    %1079 = vmatprep.mubr.f32.mxu0 0.0
    %1080 = vmatmul.mubr.f32.gmra.mrb[0].mxu0 %v48
    %v1081 = vpop.f32.mrb[0].mxu0
    %v1082 = vadd.f32 0.0, %v1081
    %v1083 = vpop.f32.mrb[0].mxu0
    %1084 = vdwg.mxu0
    %v1086 = vsel %vm37, %v1067, 0
    %v1089 = vsel %vm37, %v1072, 0
    %v1092 = vsel %vm37, %v1077, 0
    %v1095 = vsel %vm37, %v1082, 0
    %1097 = vmatprep.subr.mxu0 0.0
    %1098 = vmatpush1.msra.mxu0 %v33
    %1099 = vmatprep.subr.mxu0 0.0
    %1100 = vmatpush1.msra.mxu0 %v34
    %1101 = vmatprep.subr.mxu0 0.0
    %1102 = vmatpush1.msra.mxu0 0.0
    %1103 = vmatprep.subr.mxu0 0.0
    %1104 = vmatpush1.msra.mxu0 0.0
    %1105 = vmatprep.subr.mxu0 0.0
    %1106 = vmatpush1.msra.mxu0 0.0
    %1107 = vmatprep.subr.mxu0 0.0
    %1108 = vmatpush1.msra.mxu0 0.0
    %1109 = vmatprep.subr.mxu0 0.0
    %1110 = vmatpush1.msra.mxu0 0.0
    %1111 = vmatprep.subr.mxu0 0.0
    %1112 = vmatpush1.msra.mxu0 0.0
    %1113 = vmatprep.subr.mxu0 0.0
    %1114 = vmatpush1.msra.mxu0 0.0
    %1115 = vmatprep.subr.mxu0 0.0
    %1116 = vmatpush1.msra.mxu0 0.0
    %1117 = vmatprep.subr.mxu0 0.0
    %1118 = vmatpush1.msra.mxu0 0.0
    %1119 = vmatprep.subr.mxu0 0.0
    %1120 = vmatpush1.msra.mxu0 0.0
    %1121 = vmatprep.subr.mxu0 0.0
    %1122 = vmatpush1.msra.mxu0 0.0
    %1123 = vmatprep.subr.mxu0 0.0
    %1124 = vmatpush1.msra.mxu0 0.0
    %1125 = vmatprep.subr.mxu0 0.0
    %1126 = vmatpush1.msra.mxu0 0.0
    %1127 = vmatprep.subr.mxu0 0.0
    %1128 = vmatpush1.msra.mxu0 0.0
    %1129 = vmatprep.subr.mxu0 0.0
    %1130 = vmatpush1.msra.mxu0 0.0
    %1131 = vmatprep.subr.mxu0 0.0
    %1132 = vmatpush1.msra.mxu0 0.0
    %1133 = vmatprep.subr.mxu0 0.0
    %1134 = vmatpush1.msra.mxu0 0.0
    %1135 = vmatprep.subr.mxu0 0.0
    %1136 = vmatpush1.msra.mxu0 0.0
    %1137 = vmatprep.subr.mxu0 0.0
    %1138 = vmatpush1.msra.mxu0 0.0
    %1139 = vmatprep.subr.mxu0 0.0
    %1140 = vmatpush1.msra.mxu0 0.0
    %1141 = vmatprep.subr.mxu0 0.0
    %1142 = vmatpush1.msra.mxu0 0.0
    %1143 = vmatprep.subr.mxu0 0.0
    %1144 = vmatpush1.msra.mxu0 0.0
    %1145 = vmatprep.subr.mxu0 0.0
    %1146 = vmatpush1.msra.mxu0 0.0
    %1147 = vmatprep.subr.mxu0 0.0
    %1148 = vmatpush1.msra.mxu0 0.0
    %1149 = vmatprep.subr.mxu0 0.0
    %1150 = vmatpush1.msra.mxu0 0.0
    %1151 = vmatprep.subr.mxu0 0.0
    %1152 = vmatpush1.msra.mxu0 0.0
    %1153 = vmatprep.subr.mxu0 0.0
    %1154 = vmatpush1.msra.mxu0 0.0
    %1155 = vmatprep.subr.mxu0 0.0
    %1156 = vmatpush1.msra.mxu0 0.0
    %1157 = vmatprep.subr.mxu0 0.0
    %1158 = vmatpush1.msra.mxu0 0.0
    %1159 = vmatprep.subr.mxu0 0.0
    %1160 = vmatpush1.msra.mxu0 0.0
    %1161 = vmatprep.mubr.f32.mxu0 0.0
    %1162 = vmatmul.mubr.f32.gmra.mrb[0].mxu0 %v1086
    %v1163 = vpop.f32.mrb[0].mxu0
    %v1164 = vadd.f32 0.0, %v1163
    %v1165 = vpop.f32.mrb[0].mxu0
    %1166 = vmatprep.mubr.f32.mxu0 0.0
    %1167 = vmatmul.mubr.f32.gmra.mrb[0].mxu0 %v1089
    %v1168 = vpop.f32.mrb[0].mxu0
    %v1169 = vadd.f32 0.0, %v1168
    %v1170 = vpop.f32.mrb[0].mxu0
    %1171 = vmatprep.mubr.f32.mxu0 0.0
    %1172 = vmatmul.mubr.f32.gmra.mrb[0].mxu0 %v1092
    %v1173 = vpop.f32.mrb[0].mxu0
    %v1174 = vadd.f32 0.0, %v1173
    %v1175 = vpop.f32.mrb[0].mxu0
    %1176 = vmatprep.mubr.f32.mxu0 0.0
    %1177 = vmatmul.mubr.f32.gmra.mrb[0].mxu0 %v1095
    %v1178 = vpop.f32.mrb[0].mxu0
    %v1179 = vadd.f32 0.0, %v1178
    %v1180 = vpop.f32.mrb[0].mxu0
    %1181 = vdwg.mxu0
    %s1182 = scalar_lea.vmem [#allocation5], 160
    %1183 = vst.msk [vmem:[%s1182] sm:$0xff] %vm232, %v1164
    %1184 = vst.msk [vmem:[%s1182 + $0x8] sm:$0xff] %vm232, %v1169
    %1185 = vst.msk [vmem:[%s1182 + $0x10] sm:$0xff] %vm232, %v1174
    %1186 = vst.msk [vmem:[%s1182 + $0x18] sm:$0xff] %vm232, %v1179
    %s1187 = scalar_lea.vmem [#allocation2], 96
    %v1188 = vld [vmem:[%s1187] sm:$0xff]
    %v1189 = vld [vmem:[%s1187 + $0x8] sm:$0xff]
    %1190 = vmatprep.subr.mxu0 0.0
    %1191 = vmatpush1.msra.mxu0 %v1188
    %1192 = vmatprep.subr.mxu0 0.0
    %1193 = vmatpush1.msra.mxu0 %v1189
    %1194 = vmatprep.subr.mxu0 0.0
    %1195 = vmatpush1.msra.mxu0 0.0
    %1196 = vmatprep.subr.mxu0 0.0
    %1197 = vmatpush1.msra.mxu0 0.0
    %1198 = vmatprep.subr.mxu0 0.0
    %1199 = vmatpush1.msra.mxu0 0.0
    %1200 = vmatprep.subr.mxu0 0.0
    %1201 = vmatpush1.msra.mxu0 0.0
    %1202 = vmatprep.subr.mxu0 0.0
    %1203 = vmatpush1.msra.mxu0 0.0
    %1204 = vmatprep.subr.mxu0 0.0
    %1205 = vmatpush1.msra.mxu0 0.0
    %1206 = vmatprep.subr.mxu0 0.0
    %1207 = vmatpush1.msra.mxu0 0.0
    %1208 = vmatprep.subr.mxu0 0.0
    %1209 = vmatpush1.msra.mxu0 0.0
    %1210 = vmatprep.subr.mxu0 0.0
    %1211 = vmatpush1.msra.mxu0 0.0
    %1212 = vmatprep.subr.mxu0 0.0
    %1213 = vmatpush1.msra.mxu0 0.0
    %1214 = vmatprep.subr.mxu0 0.0
    %1215 = vmatpush1.msra.mxu0 0.0
    %1216 = vmatprep.subr.mxu0 0.0
    %1217 = vmatpush1.msra.mxu0 0.0
    %1218 = vmatprep.subr.mxu0 0.0
    %1219 = vmatpush1.msra.mxu0 0.0
    %1220 = vmatprep.subr.mxu0 0.0
    %1221 = vmatpush1.msra.mxu0 0.0
    %1222 = vmatprep.subr.mxu0 0.0
    %1223 = vmatpush1.msra.mxu0 0.0
    %1224 = vmatprep.subr.mxu0 0.0
    %1225 = vmatpush1.msra.mxu0 0.0
    %1226 = vmatprep.subr.mxu0 0.0
    %1227 = vmatpush1.msra.mxu0 0.0
    %1228 = vmatprep.subr.mxu0 0.0
    %1229 = vmatpush1.msra.mxu0 0.0
    %1230 = vmatprep.subr.mxu0 0.0
    %1231 = vmatpush1.msra.mxu0 0.0
    %1232 = vmatprep.subr.mxu0 0.0
    %1233 = vmatpush1.msra.mxu0 0.0
    %1234 = vmatprep.subr.mxu0 0.0
    %1235 = vmatpush1.msra.mxu0 0.0
    %1236 = vmatprep.subr.mxu0 0.0
    %1237 = vmatpush1.msra.mxu0 0.0
    %1238 = vmatprep.subr.mxu0 0.0
    %1239 = vmatpush1.msra.mxu0 0.0
    %1240 = vmatprep.subr.mxu0 0.0
    %1241 = vmatpush1.msra.mxu0 0.0
    %1242 = vmatprep.subr.mxu0 0.0
    %1243 = vmatpush1.msra.mxu0 0.0
    %1244 = vmatprep.subr.mxu0 0.0
    %1245 = vmatpush1.msra.mxu0 0.0
    %1246 = vmatprep.subr.mxu0 0.0
    %1247 = vmatpush1.msra.mxu0 0.0
    %1248 = vmatprep.subr.mxu0 0.0
    %1249 = vmatpush1.msra.mxu0 0.0
    %1250 = vmatprep.subr.mxu0 0.0
    %1251 = vmatpush1.msra.mxu0 0.0
    %1252 = vmatprep.subr.mxu0 0.0
    %1253 = vmatpush1.msra.mxu0 0.0
    %1254 = vmatprep.mubr.f32.mxu0 0.0
    %1255 = vmatmul.mubr.f32.gmra.mrb[0].mxu0 %v39
    %v1256 = vpop.f32.mrb[0].mxu0
    %v1257 = vadd.f32 0.0, %v1256
    %v1258 = vpop.f32.mrb[0].mxu0
    %1259 = vmatprep.mubr.f32.mxu0 0.0
    %1260 = vmatmul.mubr.f32.gmra.mrb[0].mxu0 %v42
    %v1261 = vpop.f32.mrb[0].mxu0
    %v1262 = vadd.f32 0.0, %v1261
    %v1263 = vpop.f32.mrb[0].mxu0
    %1264 = vmatprep.mubr.f32.mxu0 0.0
    %1265 = vmatmul.mubr.f32.gmra.mrb[0].mxu0 %v45
    %v1266 = vpop.f32.mrb[0].mxu0
    %v1267 = vadd.f32 0.0, %v1266
    %v1268 = vpop.f32.mrb[0].mxu0
    %1269 = vmatprep.mubr.f32.mxu0 0.0
    %1270 = vmatmul.mubr.f32.gmra.mrb[0].mxu0 %v48
    %v1271 = vpop.f32.mrb[0].mxu0
    %v1272 = vadd.f32 0.0, %v1271
    %v1273 = vpop.f32.mrb[0].mxu0
    %1274 = vdwg.mxu0
    %v1276 = vsel %vm37, %v1257, 0
    %v1279 = vsel %vm37, %v1262, 0
    %v1282 = vsel %vm37, %v1267, 0
    %v1285 = vsel %vm37, %v1272, 0
    %1287 = vmatprep.subr.mxu0 0.0
    %1288 = vmatpush1.msra.mxu0 %v33
    %1289 = vmatprep.subr.mxu0 0.0
    %1290 = vmatpush1.msra.mxu0 %v34
    %1291 = vmatprep.subr.mxu0 0.0
    %1292 = vmatpush1.msra.mxu0 0.0
    %1293 = vmatprep.subr.mxu0 0.0
    %1294 = vmatpush1.msra.mxu0 0.0
    %1295 = vmatprep.subr.mxu0 0.0
    %1296 = vmatpush1.msra.mxu0 0.0
    %1297 = vmatprep.subr.mxu0 0.0
    %1298 = vmatpush1.msra.mxu0 0.0
    %1299 = vmatprep.subr.mxu0 0.0
    %1300 = vmatpush1.msra.mxu0 0.0
    %1301 = vmatprep.subr.mxu0 0.0
    %1302 = vmatpush1.msra.mxu0 0.0
    %1303 = vmatprep.subr.mxu0 0.0
    %1304 = vmatpush1.msra.mxu0 0.0
    %1305 = vmatprep.subr.mxu0 0.0
    %1306 = vmatpush1.msra.mxu0 0.0
    %1307 = vmatprep.subr.mxu0 0.0
    %1308 = vmatpush1.msra.mxu0 0.0
    %1309 = vmatprep.subr.mxu0 0.0
    %1310 = vmatpush1.msra.mxu0 0.0
    %1311 = vmatprep.subr.mxu0 0.0
    %1312 = vmatpush1.msra.mxu0 0.0
    %1313 = vmatprep.subr.mxu0 0.0
    %1314 = vmatpush1.msra.mxu0 0.0
    %1315 = vmatprep.subr.mxu0 0.0
    %1316 = vmatpush1.msra.mxu0 0.0
    %1317 = vmatprep.subr.mxu0 0.0
    %1318 = vmatpush1.msra.mxu0 0.0
    %1319 = vmatprep.subr.mxu0 0.0
    %1320 = vmatpush1.msra.mxu0 0.0
    %1321 = vmatprep.subr.mxu0 0.0
    %1322 = vmatpush1.msra.mxu0 0.0
    %1323 = vmatprep.subr.mxu0 0.0
    %1324 = vmatpush1.msra.mxu0 0.0
    %1325 = vmatprep.subr.mxu0 0.0
    %1326 = vmatpush1.msra.mxu0 0.0
    %1327 = vmatprep.subr.mxu0 0.0
    %1328 = vmatpush1.msra.mxu0 0.0
    %1329 = vmatprep.subr.mxu0 0.0
    %1330 = vmatpush1.msra.mxu0 0.0
    %1331 = vmatprep.subr.mxu0 0.0
    %1332 = vmatpush1.msra.mxu0 0.0
    %1333 = vmatprep.subr.mxu0 0.0
    %1334 = vmatpush1.msra.mxu0 0.0
    %1335 = vmatprep.subr.mxu0 0.0
    %1336 = vmatpush1.msra.mxu0 0.0
    %1337 = vmatprep.subr.mxu0 0.0
    %1338 = vmatpush1.msra.mxu0 0.0
    %1339 = vmatprep.subr.mxu0 0.0
    %1340 = vmatpush1.msra.mxu0 0.0
    %1341 = vmatprep.subr.mxu0 0.0
    %1342 = vmatpush1.msra.mxu0 0.0
    %1343 = vmatprep.subr.mxu0 0.0
    %1344 = vmatpush1.msra.mxu0 0.0
    %1345 = vmatprep.subr.mxu0 0.0
    %1346 = vmatpush1.msra.mxu0 0.0
    %1347 = vmatprep.subr.mxu0 0.0
    %1348 = vmatpush1.msra.mxu0 0.0
    %1349 = vmatprep.subr.mxu0 0.0
    %1350 = vmatpush1.msra.mxu0 0.0
    %1351 = vmatprep.mubr.f32.mxu0 0.0
    %1352 = vmatmul.mubr.f32.gmra.mrb[0].mxu0 %v1276
    %v1353 = vpop.f32.mrb[0].mxu0
    %v1354 = vadd.f32 0.0, %v1353
    %v1355 = vpop.f32.mrb[0].mxu0
    %1356 = vmatprep.mubr.f32.mxu0 0.0
    %1357 = vmatmul.mubr.f32.gmra.mrb[0].mxu0 %v1279
    %v1358 = vpop.f32.mrb[0].mxu0
    %v1359 = vadd.f32 0.0, %v1358
    %v1360 = vpop.f32.mrb[0].mxu0
    %1361 = vmatprep.mubr.f32.mxu0 0.0
    %1362 = vmatmul.mubr.f32.gmra.mrb[0].mxu0 %v1282
    %v1363 = vpop.f32.mrb[0].mxu0
    %v1364 = vadd.f32 0.0, %v1363
    %v1365 = vpop.f32.mrb[0].mxu0
    %1366 = vmatprep.mubr.f32.mxu0 0.0
    %1367 = vmatmul.mubr.f32.gmra.mrb[0].mxu0 %v1285
    %v1368 = vpop.f32.mrb[0].mxu0
    %v1369 = vadd.f32 0.0, %v1368
    %v1370 = vpop.f32.mrb[0].mxu0
    %1371 = vdwg.mxu0
    %s1372 = scalar_lea.vmem [#allocation5], 192
    %1373 = vst.msk [vmem:[%s1372] sm:$0xff] %vm232, %v1354
    %1374 = vst.msk [vmem:[%s1372 + $0x8] sm:$0xff] %vm232, %v1359
    %1375 = vst.msk [vmem:[%s1372 + $0x10] sm:$0xff] %vm232, %v1364
    %1376 = vst.msk [vmem:[%s1372 + $0x18] sm:$0xff] %vm232, %v1369
    %s1377 = scalar_lea.vmem [#allocation2], 112
    %v1378 = vld [vmem:[%s1377] sm:$0xff]
    %v1379 = vld [vmem:[%s1377 + $0x8] sm:$0xff]
    %1380 = vmatprep.subr.mxu0 0.0
    %1381 = vmatpush1.msra.mxu0 %v1378
    %1382 = vmatprep.subr.mxu0 0.0
    %1383 = vmatpush1.msra.mxu0 %v1379
    %1384 = vmatprep.subr.mxu0 0.0
    %1385 = vmatpush1.msra.mxu0 0.0
    %1386 = vmatprep.subr.mxu0 0.0
    %1387 = vmatpush1.msra.mxu0 0.0
    %1388 = vmatprep.subr.mxu0 0.0
    %1389 = vmatpush1.msra.mxu0 0.0
    %1390 = vmatprep.subr.mxu0 0.0
    %1391 = vmatpush1.msra.mxu0 0.0
    %1392 = vmatprep.subr.mxu0 0.0
    %1393 = vmatpush1.msra.mxu0 0.0
    %1394 = vmatprep.subr.mxu0 0.0
    %1395 = vmatpush1.msra.mxu0 0.0
    %1396 = vmatprep.subr.mxu0 0.0
    %1397 = vmatpush1.msra.mxu0 0.0
    %1398 = vmatprep.subr.mxu0 0.0
    %1399 = vmatpush1.msra.mxu0 0.0
    %1400 = vmatprep.subr.mxu0 0.0
    %1401 = vmatpush1.msra.mxu0 0.0
    %1402 = vmatprep.subr.mxu0 0.0
    %1403 = vmatpush1.msra.mxu0 0.0
    %1404 = vmatprep.subr.mxu0 0.0
    %1405 = vmatpush1.msra.mxu0 0.0
    %1406 = vmatprep.subr.mxu0 0.0
    %1407 = vmatpush1.msra.mxu0 0.0
    %1408 = vmatprep.subr.mxu0 0.0
    %1409 = vmatpush1.msra.mxu0 0.0
    %1410 = vmatprep.subr.mxu0 0.0
    %1411 = vmatpush1.msra.mxu0 0.0
    %1412 = vmatprep.subr.mxu0 0.0
    %1413 = vmatpush1.msra.mxu0 0.0
    %1414 = vmatprep.subr.mxu0 0.0
    %1415 = vmatpush1.msra.mxu0 0.0
    %1416 = vmatprep.subr.mxu0 0.0
    %1417 = vmatpush1.msra.mxu0 0.0
    %1418 = vmatprep.subr.mxu0 0.0
    %1419 = vmatpush1.msra.mxu0 0.0
    %1420 = vmatprep.subr.mxu0 0.0
    %1421 = vmatpush1.msra.mxu0 0.0
    %1422 = vmatprep.subr.mxu0 0.0
    %1423 = vmatpush1.msra.mxu0 0.0
    %1424 = vmatprep.subr.mxu0 0.0
    %1425 = vmatpush1.msra.mxu0 0.0
    %1426 = vmatprep.subr.mxu0 0.0
    %1427 = vmatpush1.msra.mxu0 0.0
    %1428 = vmatprep.subr.mxu0 0.0
    %1429 = vmatpush1.msra.mxu0 0.0
    %1430 = vmatprep.subr.mxu0 0.0
    %1431 = vmatpush1.msra.mxu0 0.0
    %1432 = vmatprep.subr.mxu0 0.0
    %1433 = vmatpush1.msra.mxu0 0.0
    %1434 = vmatprep.subr.mxu0 0.0
    %1435 = vmatpush1.msra.mxu0 0.0
    %1436 = vmatprep.subr.mxu0 0.0
    %1437 = vmatpush1.msra.mxu0 0.0
    %1438 = vmatprep.subr.mxu0 0.0
    %1439 = vmatpush1.msra.mxu0 0.0
    %1440 = vmatprep.subr.mxu0 0.0
    %1441 = vmatpush1.msra.mxu0 0.0
    %1442 = vmatprep.subr.mxu0 0.0
    %1443 = vmatpush1.msra.mxu0 0.0
    %1444 = vmatprep.mubr.f32.mxu0 0.0
    %1445 = vmatmul.mubr.f32.gmra.mrb[0].mxu0 %v39
    %v1446 = vpop.f32.mrb[0].mxu0
    %v1447 = vadd.f32 0.0, %v1446
    %v1448 = vpop.f32.mrb[0].mxu0
    %1449 = vmatprep.mubr.f32.mxu0 0.0
    %1450 = vmatmul.mubr.f32.gmra.mrb[0].mxu0 %v42
    %v1451 = vpop.f32.mrb[0].mxu0
    %v1452 = vadd.f32 0.0, %v1451
    %v1453 = vpop.f32.mrb[0].mxu0
    %1454 = vmatprep.mubr.f32.mxu0 0.0
    %1455 = vmatmul.mubr.f32.gmra.mrb[0].mxu0 %v45
    %v1456 = vpop.f32.mrb[0].mxu0
    %v1457 = vadd.f32 0.0, %v1456
    %v1458 = vpop.f32.mrb[0].mxu0
    %1459 = vmatprep.mubr.f32.mxu0 0.0
    %1460 = vmatmul.mubr.f32.gmra.mrb[0].mxu0 %v48
    %v1461 = vpop.f32.mrb[0].mxu0
    %v1462 = vadd.f32 0.0, %v1461
    %v1463 = vpop.f32.mrb[0].mxu0
    %1464 = vdwg.mxu0
    %v1466 = vsel %vm37, %v1447, 0
    %v1469 = vsel %vm37, %v1452, 0
    %v1472 = vsel %vm37, %v1457, 0
    %v1475 = vsel %vm37, %v1462, 0
    %1477 = vmatprep.subr.mxu0 0.0
    %1478 = vmatpush1.msra.mxu0 %v33
    %1479 = vmatprep.subr.mxu0 0.0
    %1480 = vmatpush1.msra.mxu0 %v34
    %1481 = vmatprep.subr.mxu0 0.0
    %1482 = vmatpush1.msra.mxu0 0.0
    %1483 = vmatprep.subr.mxu0 0.0
    %1484 = vmatpush1.msra.mxu0 0.0
    %1485 = vmatprep.subr.mxu0 0.0
    %1486 = vmatpush1.msra.mxu0 0.0
    %1487 = vmatprep.subr.mxu0 0.0
    %1488 = vmatpush1.msra.mxu0 0.0
    %1489 = vmatprep.subr.mxu0 0.0
    %1490 = vmatpush1.msra.mxu0 0.0
    %1491 = vmatprep.subr.mxu0 0.0
    %1492 = vmatpush1.msra.mxu0 0.0
    %1493 = vmatprep.subr.mxu0 0.0
    %1494 = vmatpush1.msra.mxu0 0.0
    %1495 = vmatprep.subr.mxu0 0.0
    %1496 = vmatpush1.msra.mxu0 0.0
    %1497 = vmatprep.subr.mxu0 0.0
    %1498 = vmatpush1.msra.mxu0 0.0
    %1499 = vmatprep.subr.mxu0 0.0
    %1500 = vmatpush1.msra.mxu0 0.0
    %1501 = vmatprep.subr.mxu0 0.0
    %1502 = vmatpush1.msra.mxu0 0.0
    %1503 = vmatprep.subr.mxu0 0.0
    %1504 = vmatpush1.msra.mxu0 0.0
    %1505 = vmatprep.subr.mxu0 0.0
    %1506 = vmatpush1.msra.mxu0 0.0
    %1507 = vmatprep.subr.mxu0 0.0
    %1508 = vmatpush1.msra.mxu0 0.0
    %1509 = vmatprep.subr.mxu0 0.0
    %1510 = vmatpush1.msra.mxu0 0.0
    %1511 = vmatprep.subr.mxu0 0.0
    %1512 = vmatpush1.msra.mxu0 0.0
    %1513 = vmatprep.subr.mxu0 0.0
    %1514 = vmatpush1.msra.mxu0 0.0
    %1515 = vmatprep.subr.mxu0 0.0
    %1516 = vmatpush1.msra.mxu0 0.0
    %1517 = vmatprep.subr.mxu0 0.0
    %1518 = vmatpush1.msra.mxu0 0.0
    %1519 = vmatprep.subr.mxu0 0.0
    %1520 = vmatpush1.msra.mxu0 0.0
    %1521 = vmatprep.subr.mxu0 0.0
    %1522 = vmatpush1.msra.mxu0 0.0
    %1523 = vmatprep.subr.mxu0 0.0
    %1524 = vmatpush1.msra.mxu0 0.0
    %1525 = vmatprep.subr.mxu0 0.0
    %1526 = vmatpush1.msra.mxu0 0.0
    %1527 = vmatprep.subr.mxu0 0.0
    %1528 = vmatpush1.msra.mxu0 0.0
    %1529 = vmatprep.subr.mxu0 0.0
    %1530 = vmatpush1.msra.mxu0 0.0
    %1531 = vmatprep.subr.mxu0 0.0
    %1532 = vmatpush1.msra.mxu0 0.0
    %1533 = vmatprep.subr.mxu0 0.0
    %1534 = vmatpush1.msra.mxu0 0.0
    %1535 = vmatprep.subr.mxu0 0.0
    %1536 = vmatpush1.msra.mxu0 0.0
    %1537 = vmatprep.subr.mxu0 0.0
    %1538 = vmatpush1.msra.mxu0 0.0
    %1539 = vmatprep.subr.mxu0 0.0
    %1540 = vmatpush1.msra.mxu0 0.0
    %1541 = vmatprep.mubr.f32.mxu0 0.0
    %1542 = vmatmul.mubr.f32.gmra.mrb[0].mxu0 %v1466
    %v1543 = vpop.f32.mrb[0].mxu0
    %v1544 = vadd.f32 0.0, %v1543
    %v1545 = vpop.f32.mrb[0].mxu0
    %1546 = vmatprep.mubr.f32.mxu0 0.0
    %1547 = vmatmul.mubr.f32.gmra.mrb[0].mxu0 %v1469
    %v1548 = vpop.f32.mrb[0].mxu0
    %v1549 = vadd.f32 0.0, %v1548
    %v1550 = vpop.f32.mrb[0].mxu0
    %1551 = vmatprep.mubr.f32.mxu0 0.0
    %1552 = vmatmul.mubr.f32.gmra.mrb[0].mxu0 %v1472
    %v1553 = vpop.f32.mrb[0].mxu0
    %v1554 = vadd.f32 0.0, %v1553
    %v1555 = vpop.f32.mrb[0].mxu0
    %1556 = vmatprep.mubr.f32.mxu0 0.0
    %1557 = vmatmul.mubr.f32.gmra.mrb[0].mxu0 %v1475
    %v1558 = vpop.f32.mrb[0].mxu0
    %v1559 = vadd.f32 0.0, %v1558
    %v1560 = vpop.f32.mrb[0].mxu0
    %1561 = vdwg.mxu0
    %s1562 = scalar_lea.vmem [#allocation5], 224
    %1563 = vst.msk [vmem:[%s1562] sm:$0xff] %vm232, %v1544
    %1564 = vst.msk [vmem:[%s1562 + $0x8] sm:$0xff] %vm232, %v1549
    %1565 = vst.msk [vmem:[%s1562 + $0x10] sm:$0xff] %vm232, %v1554
    %1566 = vst.msk [vmem:[%s1562 + $0x18] sm:$0xff] %vm232, %v1559
    // Predicated region
    $region18: #{tpu_custom_call.1} parent=1 // pred_check
      _
    $region19: #{tpu_custom_call.1} parent=1 // pred_check_branch
      %1568 = sbr.rel (0) target = $region21
    $region20: #{tpu_custom_call.1} parent=1 // pred_region
      %s1570 = ssub.s32 4096, 4096
      %1571 = vsyncadd [#allocation4], %s1570
      %s1572 = sshll.u32 [#allocation5], 4
      %s1573 = int_to_ptr.vmem [resolvable:$true] %s1572
      %1578 = dma.vmem_to_hbm [thread:$0]  %s1573, 4096, %s3, [#allocation4], 128, 128, 8
    $region21: #{tpu_custom_call.1} parent=1 // pred_fallthru
      _
    // Predicated region
    $region22: #{tpu_custom_call.1} parent=1 // pred_check
      _
    $region23: #{tpu_custom_call.1} parent=1 // pred_check_branch
      %1580 = sbr.rel (0) target = $region25
    $region24: #{tpu_custom_call.1} parent=1 // pred_region
      %1581 = dma.done [#allocation4], 4096
    $region25: #{tpu_custom_call.1} parent=1 // pred_fallthru
      _
    %1582 = vsyncpa [#allocation3], 1
    %1583 = vsyncpa [#allocation4], 1

</llo_original>
